<compile_context>
chip_gen: v5e
topology: v5e:2x2
jax: 0.10.0
libtpu: 0.0.40
codegen_flags: <defaults>
</compile_context>

<pallas_src>
import jax
import jax.numpy as jnp
from jax.experimental import pallas as pl
from jax.experimental.pallas import tpu as pltpu

D_MODEL = 64
N_HEADS = 4
HEAD_DIM = D_MODEL // N_HEADS
FF_DIM = 4 * D_MODEL
OUT_DIM = 128
LN_EPS = 1e-5


def _layer_norm(x, w, b):
    mean = jnp.mean(x, axis=-1, keepdims=True)
    var = jnp.mean((x - mean) ** 2, axis=-1, keepdims=True)
    return (x - mean) * jax.lax.rsqrt(var + LN_EPS) * w + b


def highway_kernel(obs_ref,
                   w_in_ref, w_qkv_ref, w_ao_ref, w_ff1_ref, w_ff2_ref,
                   w_out_ref, vd_ref, vw_ref,
                   o_ref):
    TB, L, F = obs_ref.shape          # L = S + 1 (fusion slot pre-padded on host)
    M = TB * L

    # ---- unpack the small packed vectors (each row is one (1, D)-style vector)
    vd = vd_ref[...]                  # (10, D_MODEL)
    b_in, ego, nbr, fus = vd[0:1], vd[1:2], vd[2:3], vd[3:4]
    b_ao = vd[4:5]
    ln1_w, ln1_b = vd[5:6], vd[6:7]
    b_ff2 = vd[7:8]
    ln2_w, ln2_b = vd[8:9], vd[9:10]

    vw = vw_ref[...]                  # (3, FF_DIM), rows zero-padded to FF_DIM
    b_qkv = vw[0:1, 0:3 * D_MODEL]
    b_ff1 = vw[1:2, 0:FF_DIM]
    b_out = vw[2:3, 0:OUT_DIM]

    # ---- input projection on the flattened (TB*L, F) slab (weights pre-transposed)
    x = obs_ref[...].reshape(M, F)
    h = jnp.dot(x, w_in_ref[...], preferred_element_type=jnp.float32) + b_in

    # token index within each sequence: 0 -> ego, 1..S-1 -> neighbor, L-1 -> fusion
    tok = jax.lax.broadcasted_iota(jnp.int32, (M, 1), 0) % L
    h = jnp.where(tok == L - 1, fus, h + jnp.where(tok == 0, ego, nbr))

    # ---- TransformerEncoderLayer (post-norm, ReLU, dropout=0) ----
    qkv = jnp.dot(h, w_qkv_ref[...], preferred_element_type=jnp.float32) + b_qkv
    q = qkv[:, 0:D_MODEL].reshape(TB, L, D_MODEL)
    k = qkv[:, D_MODEL:2 * D_MODEL].reshape(TB, L, D_MODEL)
    v = qkv[:, 2 * D_MODEL:3 * D_MODEL].reshape(TB, L, D_MODEL)

    scale = 1.0 / (HEAD_DIM ** 0.5)
    heads = []
    for hi in range(N_HEADS):
        sl = slice(hi * HEAD_DIM, (hi + 1) * HEAD_DIM)
        qh, kh, vh = q[..., sl], k[..., sl], v[..., sl]          # (TB, L, Hd)
        s = jnp.einsum('bld,bmd->blm', qh, kh,
                       preferred_element_type=jnp.float32) * scale
        s = s - jnp.max(s, axis=-1, keepdims=True)
        p = jnp.exp(s)
        p = p * pl.reciprocal(jnp.sum(p, axis=-1, keepdims=True), approx=True)
        heads.append(jnp.einsum('blm,bmd->bld', p, vh,
                                preferred_element_type=jnp.float32))
    attn = jnp.concatenate(heads, axis=-1).reshape(M, D_MODEL)
    attn = jnp.dot(attn, w_ao_ref[...],
                   preferred_element_type=jnp.float32) + b_ao

    x1 = _layer_norm(h + attn, ln1_w, ln1_b)

    ff = jnp.dot(x1, w_ff1_ref[...],
                 preferred_element_type=jnp.float32) + b_ff1
    ff = jnp.maximum(ff, 0.0)
    ff = jnp.dot(ff, w_ff2_ref[...],
                 preferred_element_type=jnp.float32) + b_ff2

    x2 = _layer_norm(x1 + ff, ln2_w, ln2_b)

    # take the last (fusion) token of every sequence, project to OUT_DIM
    last = x2.reshape(TB, L, D_MODEL)[:, L - 1:L, :].reshape(TB, D_MODEL)
    o_ref[...] = jnp.dot(last, w_out_ref[...],
                         preferred_element_type=jnp.float32) + b_out


def highway_forward(obs, params, block_b=128):
    B, S, F = obs.shape
    L = S + 1
    TB = min(block_b, B)
    B_pad = -(-B // TB) * TB
    nb = B_pad // TB

    # ---- host-side prep (free: weights are constants) ----
    w_in_t = params["w_in"].T        # (F, D)
    w_qkv_t = params["w_qkv"].T      # (D, 3D)
    w_ao_t = params["w_ao"].T        # (D, D)
    w_ff1_t = params["w_ff1"].T      # (D, FF)
    w_ff2_t = params["w_ff2"].T      # (FF, D)
    w_out_t = params["w_out"].T      # (D, OUT)

    vecs_d = jnp.concatenate([
        params["b_in"], params["ego"], params["nbr"], params["fus"],
        params["b_ao"], params["ln1_w"], params["ln1_b"],
        params["b_ff2"], params["ln2_w"], params["ln2_b"]], axis=0)  # (10, D)

    def _pad_lanes(v):
        return jnp.pad(v, ((0, 0), (0, FF_DIM - v.shape[1])))

    vecs_wide = jnp.concatenate([
        _pad_lanes(params["b_qkv"]),
        _pad_lanes(params["b_ff1"]),
        _pad_lanes(params["b_out"])], axis=0)                        # (3, FF)

    # pad batch to a multiple of TB and append one zero token row per sequence
    # (the fusion slot; its value is overwritten in-kernel by the fusion embedding)
    obs_pad = jnp.pad(obs, ((0, B_pad - B), (0, 1), (0, 0)))

    weights = [w_in_t, w_qkv_t, w_ao_t, w_ff1_t, w_ff2_t, w_out_t,
               vecs_d, vecs_wide]
    w_specs = [pl.BlockSpec(w.shape, lambda i, _n=w.ndim: (0,) * _n)
               for w in weights]

    out = pl.pallas_call(
        highway_kernel,
        out_shape=jax.ShapeDtypeStruct((B_pad, OUT_DIM), jnp.float32),
        grid_spec=pltpu.PrefetchScalarGridSpec(
            num_scalar_prefetch=0,
            grid=(nb,),
            in_specs=[pl.BlockSpec((TB, L, F), lambda i: (i, 0, 0))] + w_specs,
            out_specs=pl.BlockSpec((TB, OUT_DIM), lambda i: (i, 0)),
        ),
        compiler_params=pltpu.CompilerParams(
            dimension_semantics=("parallel",)),
    )(obs_pad, *weights)
    return out[:B]


def init_params(key, n_features):
    keys = jax.random.split(key, 16)

    def normal(k, shape, scale=0.05):
        return (scale * jax.random.normal(k, shape)).astype(jnp.float32)

    return {
        "w_in":  normal(keys[0], (D_MODEL, n_features)),
        "b_in":  normal(keys[1], (1, D_MODEL)),
        "ego":   normal(keys[2], (1, D_MODEL), 1.0),
        "nbr":   normal(keys[3], (1, D_MODEL), 1.0),
        "fus":   normal(keys[4], (1, D_MODEL), 1.0),
        "w_qkv": normal(keys[5], (3 * D_MODEL, D_MODEL)),
        "b_qkv": normal(keys[6], (1, 3 * D_MODEL)),
        "w_ao":  normal(keys[7], (D_MODEL, D_MODEL)),
        "b_ao":  normal(keys[8], (1, D_MODEL)),
        "ln1_w": jnp.ones((1, D_MODEL), jnp.float32),
        "ln1_b": jnp.zeros((1, D_MODEL), jnp.float32),
        "w_ff1": normal(keys[9], (FF_DIM, D_MODEL)),
        "b_ff1": normal(keys[10], (1, FF_DIM)),
        "w_ff2": normal(keys[11], (D_MODEL, FF_DIM)),
        "b_ff2": normal(keys[12], (1, D_MODEL)),
        "ln2_w": jnp.ones((1, D_MODEL), jnp.float32),
        "ln2_b": jnp.zeros((1, D_MODEL), jnp.float32),
        "w_out": normal(keys[13], (OUT_DIM, D_MODEL)),
        "b_out": normal(keys[14], (1, OUT_DIM)),
    }


def reference_forward(obs, p):
    """Pure-JAX reference mirroring the PyTorch forward (batched)."""
    B, S, _ = obs.shape
    h = jnp.einsum('bsf,df->bsd', obs, p["w_in"]) + p["b_in"]
    tok = jnp.arange(S)[None, :, None]
    h = h + jnp.where(tok == 0, p["ego"], p["nbr"])
    h = jnp.concatenate(
        [h, jnp.broadcast_to(p["fus"], (B, 1, D_MODEL))], axis=1)
    L = S + 1

    qkv = jnp.einsum('bld,ed->ble', h, p["w_qkv"]) + p["b_qkv"]
    q = qkv[..., :D_MODEL].reshape(B, L, N_HEADS, HEAD_DIM)
    k = qkv[..., D_MODEL:2 * D_MODEL].reshape(B, L, N_HEADS, HEAD_DIM)
    v = qkv[..., 2 * D_MODEL:].reshape(B, L, N_HEADS, HEAD_DIM)
    s = jnp.einsum('blhd,bmhd->bhlm', q, k) / (HEAD_DIM ** 0.5)
    pr = jax.nn.softmax(s, axis=-1)
    attn = jnp.einsum('bhlm,bmhd->blhd', pr, v).reshape(B, L, D_MODEL)
    attn = attn @ p["w_ao"].T + p["b_ao"]

    x = _layer_norm(h + attn, p["ln1_w"], p["ln1_b"])
    ff = jnp.maximum(x @ p["w_ff1"].T + p["b_ff1"], 0.0)
    ff = ff @ p["w_ff2"].T + p["b_ff2"]
    x = _layer_norm(x + ff, p["ln2_w"], p["ln2_b"])
    return x[:, -1] @ p["w_out"].T + p["b_out"]


if __name__ == "__main__":
    # small shapes: batch=2, 7 tokens (1 ego + 6 neighbors), 16 features.
    # After the fusion token is appended the transformer sequence length is 8.
    B, S, F = 2, 7, 16
    key = jax.random.PRNGKey(0)
    k_obs, k_par = jax.random.split(key)
    obs = jax.random.normal(k_obs, (B, S, F), dtype=jnp.float32)
    params = init_params(k_par, F)

    out = jax.block_until_ready(highway_forward(obs, params))
    ref = jax.block_until_ready(reference_forward(obs, params))

    assert out.shape == (B, OUT_DIM), out.shape
    # slightly relaxed tolerance to cover the EUP approximate reciprocal
    if not jnp.allclose(out, ref, rtol=2e-3, atol=2e-3):
        err = float(jnp.max(jnp.abs(out - ref)))
        raise AssertionError(f"Pallas kernel mismatch, max abs err = {err}")
    print("KERNEL_OK")
</pallas_src>

<mosaic_0001>
module attributes {stable_mosaic.version = 11 : i64} {
  func.func @highway_kernel(%arg0: i32, %arg1: memref<2x8x16xf32, #tpu.memory_space<vmem>>, %arg2: memref<16x64xf32, #tpu.memory_space<vmem>>, %arg3: memref<64x192xf32, #tpu.memory_space<vmem>>, %arg4: memref<64x64xf32, #tpu.memory_space<vmem>>, %arg5: memref<64x256xf32, #tpu.memory_space<vmem>>, %arg6: memref<256x64xf32, #tpu.memory_space<vmem>>, %arg7: memref<64x128xf32, #tpu.memory_space<vmem>>, %arg8: memref<10x64xf32, #tpu.memory_space<vmem>>, %arg9: memref<3x256xf32, #tpu.memory_space<vmem>>, %arg10: memref<2x128xf32, #tpu.memory_space<vmem>>) attributes {dimension_semantics = [#tpu.dimension_semantics<parallel>], iteration_bounds = array<i64: 1>, scalar_prefetch = 0 : i64, scratch_operands = 0 : i64, tpu.core_type = #tpu.core_type<tc>, window_params = [{transform_indices = @transform_0, window_bounds = array<i64: 2, 8, 16>}, {pipeline_mode = #tpu.pipeline_mode<synchronous>, transform_indices = @transform_1, window_bounds = array<i64: 16, 64>}, {pipeline_mode = #tpu.pipeline_mode<synchronous>, transform_indices = @transform_2, window_bounds = array<i64: 64, 192>}, {pipeline_mode = #tpu.pipeline_mode<synchronous>, transform_indices = @transform_3, window_bounds = array<i64: 64, 64>}, {pipeline_mode = #tpu.pipeline_mode<synchronous>, transform_indices = @transform_4, window_bounds = array<i64: 64, 256>}, {pipeline_mode = #tpu.pipeline_mode<synchronous>, transform_indices = @transform_5, window_bounds = array<i64: 256, 64>}, {pipeline_mode = #tpu.pipeline_mode<synchronous>, transform_indices = @transform_6, window_bounds = array<i64: 64, 128>}, {pipeline_mode = #tpu.pipeline_mode<synchronous>, transform_indices = @transform_7, window_bounds = array<i64: 10, 64>}, {pipeline_mode = #tpu.pipeline_mode<synchronous>, transform_indices = @transform_8, window_bounds = array<i64: 3, 256>}, {transform_indices = @transform_9, window_bounds = array<i64: 2, 128>}]} {
    %c0 = arith.constant 0 : index
    %c0_0 = arith.constant 0 : index
    %0 = vector.load %arg8[%c0, %c0_0] : memref<10x64xf32, #tpu.memory_space<vmem>>, vector<10x64xf32>
    %1 = vector.extract_strided_slice %0 {offsets = [0, 0], sizes = [1, 64], strides = [1, 1]} : vector<10x64xf32> to vector<1x64xf32>
    %2 = vector.extract_strided_slice %0 {offsets = [1, 0], sizes = [1, 64], strides = [1, 1]} : vector<10x64xf32> to vector<1x64xf32>
    %3 = vector.extract_strided_slice %0 {offsets = [2, 0], sizes = [1, 64], strides = [1, 1]} : vector<10x64xf32> to vector<1x64xf32>
    %4 = vector.extract_strided_slice %0 {offsets = [3, 0], sizes = [1, 64], strides = [1, 1]} : vector<10x64xf32> to vector<1x64xf32>
    %5 = vector.extract_strided_slice %0 {offsets = [4, 0], sizes = [1, 64], strides = [1, 1]} : vector<10x64xf32> to vector<1x64xf32>
    %6 = vector.extract_strided_slice %0 {offsets = [5, 0], sizes = [1, 64], strides = [1, 1]} : vector<10x64xf32> to vector<1x64xf32>
    %7 = vector.extract_strided_slice %0 {offsets = [6, 0], sizes = [1, 64], strides = [1, 1]} : vector<10x64xf32> to vector<1x64xf32>
    %8 = vector.extract_strided_slice %0 {offsets = [7, 0], sizes = [1, 64], strides = [1, 1]} : vector<10x64xf32> to vector<1x64xf32>
    %9 = vector.extract_strided_slice %0 {offsets = [8, 0], sizes = [1, 64], strides = [1, 1]} : vector<10x64xf32> to vector<1x64xf32>
    %10 = vector.extract_strided_slice %0 {offsets = [9, 0], sizes = [1, 64], strides = [1, 1]} : vector<10x64xf32> to vector<1x64xf32>
    %c0_1 = arith.constant 0 : index
    %c0_2 = arith.constant 0 : index
    %11 = vector.load %arg9[%c0_1, %c0_2] : memref<3x256xf32, #tpu.memory_space<vmem>>, vector<3x256xf32>
    %12 = vector.extract_strided_slice %11 {offsets = [0, 0], sizes = [1, 192], strides = [1, 1]} : vector<3x256xf32> to vector<1x192xf32>
    %13 = vector.extract_strided_slice %11 {offsets = [1, 0], sizes = [1, 256], strides = [1, 1]} : vector<3x256xf32> to vector<1x256xf32>
    %14 = vector.extract_strided_slice %11 {offsets = [2, 0], sizes = [1, 128], strides = [1, 1]} : vector<3x256xf32> to vector<1x128xf32>
    %c0_3 = arith.constant 0 : index
    %c0_4 = arith.constant 0 : index
    %c0_5 = arith.constant 0 : index
    %15 = vector.load %arg1[%c0_3, %c0_4, %c0_5] : memref<2x8x16xf32, #tpu.memory_space<vmem>>, vector<2x8x16xf32>
    %16 = vector.shape_cast %15 : vector<2x8x16xf32> to vector<16x16xf32>
    %c0_6 = arith.constant 0 : index
    %c0_7 = arith.constant 0 : index
    %17 = vector.load %arg2[%c0_6, %c0_7] : memref<16x64xf32, #tpu.memory_space<vmem>>, vector<16x64xf32>
    %cst = arith.constant dense<0.000000e+00> : vector<16x64xf32>
    %18 = tpu.matmul %16, %17, %cst {dimension_numbers = #tpu.dot_dimension_numbers<[1], [0], [0], [1], [0, 0, 1, 1], [], []>} : vector<16x16xf32>, vector<16x64xf32>, vector<16x64xf32> -> vector<16x64xf32>
    %19 = vector.broadcast %1 : vector<1x64xf32> to vector<16x64xf32>
    %20 = arith.addf %18, %19 : vector<16x64xf32>
    %21 = tpu.iota {dimensions = array<i32: 0>} : vector<16x1xi32>
    %c8_i32 = arith.constant 8 : i32
    %c0_i32 = arith.constant 0 : i32
    %22 = arith.cmpi eq, %c8_i32, %c0_i32 : i32
    %c1_i32 = arith.constant 1 : i32
    %23 = arith.select %22, %c1_i32, %c8_i32 : i32
    %24 = vector.broadcast %23 : i32 to vector<16x1xi32>
    %25 = arith.remsi %21, %24 : vector<16x1xi32>
    %c0_i32_8 = arith.constant 0 : i32
    %26 = vector.broadcast %c0_i32_8 : i32 to vector<16x1xi32>
    %27 = arith.cmpi ne, %25, %26 : vector<16x1xi32>
    %c0_i32_9 = arith.constant 0 : i32
    %28 = vector.broadcast %c0_i32_9 : i32 to vector<16x1xi32>
    %29 = arith.cmpi slt, %25, %28 : vector<16x1xi32>
    %c0_i32_10 = arith.constant 0 : i32
    %30 = arith.cmpi slt, %23, %c0_i32_10 : i32
    %31 = vector.broadcast %30 : i1 to vector<16x1xi1>
    %32 = vector.broadcast %31 : vector<16x1xi1> to vector<16x1xi1>
    %33 = arith.xori %29, %32 : vector<16x1xi1>
    %34 = arith.andi %33, %27 : vector<16x1xi1>
    %35 = vector.broadcast %23 : i32 to vector<16x1xi32>
    %36 = arith.addi %25, %35 : vector<16x1xi32>
    %37 = arith.select %34, %36, %25 : vector<16x1xi1>, vector<16x1xi32>
    %c7_i32 = arith.constant 7 : i32
    %38 = vector.broadcast %c7_i32 : i32 to vector<16x1xi32>
    %39 = arith.cmpi eq, %37, %38 : vector<16x1xi32>
    %c0_i32_11 = arith.constant 0 : i32
    %40 = vector.broadcast %c0_i32_11 : i32 to vector<16x1xi32>
    %41 = arith.cmpi eq, %37, %40 : vector<16x1xi32>
    %42 = vector.shape_cast %41 : vector<16x1xi1> to vector<16x1xi1>
    %43 = vector.broadcast %42 : vector<16x1xi1> to vector<16x64xi1>
    %44 = vector.shape_cast %2 : vector<1x64xf32> to vector<1x64xf32>
    %45 = vector.broadcast %44 : vector<1x64xf32> to vector<16x64xf32>
    %46 = vector.shape_cast %3 : vector<1x64xf32> to vector<1x64xf32>
    %47 = vector.broadcast %46 : vector<1x64xf32> to vector<16x64xf32>
    %48 = arith.select %43, %45, %47 : vector<16x64xi1>, vector<16x64xf32>
    %49 = arith.addf %20, %48 : vector<16x64xf32>
    %50 = vector.shape_cast %39 : vector<16x1xi1> to vector<16x1xi1>
    %51 = vector.broadcast %50 : vector<16x1xi1> to vector<16x64xi1>
    %52 = vector.shape_cast %4 : vector<1x64xf32> to vector<1x64xf32>
    %53 = vector.broadcast %52 : vector<1x64xf32> to vector<16x64xf32>
    %54 = arith.select %51, %53, %49 : vector<16x64xi1>, vector<16x64xf32>
    %c0_12 = arith.constant 0 : index
    %c0_13 = arith.constant 0 : index
    %55 = vector.load %arg3[%c0_12, %c0_13] : memref<64x192xf32, #tpu.memory_space<vmem>>, vector<64x192xf32>
    %cst_14 = arith.constant dense<0.000000e+00> : vector<16x192xf32>
    %56 = tpu.matmul %54, %55, %cst_14 {dimension_numbers = #tpu.dot_dimension_numbers<[1], [0], [0], [1], [0, 0, 1, 1], [], []>} : vector<16x64xf32>, vector<64x192xf32>, vector<16x192xf32> -> vector<16x192xf32>
    %57 = vector.broadcast %12 : vector<1x192xf32> to vector<16x192xf32>
    %58 = arith.addf %56, %57 : vector<16x192xf32>
    %59 = vector.extract_strided_slice %58 {offsets = [0, 0], sizes = [16, 64], strides = [1, 1]} : vector<16x192xf32> to vector<16x64xf32>
    %60 = vector.shape_cast %59 : vector<16x64xf32> to vector<2x8x64xf32>
    %61 = vector.extract_strided_slice %58 {offsets = [0, 64], sizes = [16, 64], strides = [1, 1]} : vector<16x192xf32> to vector<16x64xf32>
    %62 = vector.shape_cast %61 : vector<16x64xf32> to vector<2x8x64xf32>
    %63 = vector.extract_strided_slice %58 {offsets = [0, 128], sizes = [16, 64], strides = [1, 1]} : vector<16x192xf32> to vector<16x64xf32>
    %64 = vector.shape_cast %63 : vector<16x64xf32> to vector<2x8x64xf32>
    %65 = vector.extract_strided_slice %60 {offsets = [0, 0, 0], sizes = [2, 8, 16], strides = [1, 1, 1]} : vector<2x8x64xf32> to vector<2x8x16xf32>
    %66 = vector.extract_strided_slice %62 {offsets = [0, 0, 0], sizes = [2, 8, 16], strides = [1, 1, 1]} : vector<2x8x64xf32> to vector<2x8x16xf32>
    %67 = vector.extract_strided_slice %64 {offsets = [0, 0, 0], sizes = [2, 8, 16], strides = [1, 1, 1]} : vector<2x8x64xf32> to vector<2x8x16xf32>
    "tpu.trace_start"() <{level = 10 : i32, message = "bld,bmd->blm"}> : () -> ()
    %cst_15 = arith.constant dense<0.000000e+00> : vector<2x8x8xf32>
    %68 = tpu.matmul %65, %66, %cst_15 {dimension_numbers = #tpu.dot_dimension_numbers<[2], [2], [1], [1], [0, 0, 0, 1, 1, 1], [0], [0]>} : vector<2x8x16xf32>, vector<2x8x16xf32>, vector<2x8x8xf32> -> vector<2x8x8xf32>
    "tpu.trace_stop"() : () -> ()
    %cst_16 = arith.constant 2.500000e-01 : f32
    %69 = vector.broadcast %cst_16 : f32 to vector<2x8x8xf32>
    %70 = arith.mulf %68, %69 : vector<2x8x8xf32>
    %cst_17 = arith.constant dense<0xFF800000> : vector<2x8xf32>
    %71 = vector.multi_reduction <maximumf>, %70, %cst_17 [2] : vector<2x8x8xf32> to vector<2x8xf32>
    %72 = vector.shape_cast %71 : vector<2x8xf32> to vector<2x8x1xf32>
    %73 = vector.broadcast %72 : vector<2x8x1xf32> to vector<2x8x8xf32>
    %74 = arith.subf %70, %73 : vector<2x8x8xf32>
    %75 = math.exp %74 : vector<2x8x8xf32>
    %cst_18 = arith.constant dense<0.000000e+00> : vector<2x8xf32>
    %76 = vector.multi_reduction <add>, %75, %cst_18 [2] : vector<2x8x8xf32> to vector<2x8xf32>
    %77 = vector.shape_cast %76 : vector<2x8xf32> to vector<2x8x1xf32>
    %78 = tpu.reciprocal %77 {approx = true} : vector<2x8x1xf32> -> vector<2x8x1xf32>
    %79 = vector.broadcast %78 : vector<2x8x1xf32> to vector<2x8x8xf32>
    %80 = arith.mulf %75, %79 : vector<2x8x8xf32>
    "tpu.trace_start"() <{level = 10 : i32, message = "blm,bmd->bld"}> : () -> ()
    %cst_19 = arith.constant dense<0.000000e+00> : vector<2x8x16xf32>
    %81 = tpu.matmul %80, %67, %cst_19 {dimension_numbers = #tpu.dot_dimension_numbers<[2], [1], [1], [2], [0, 0, 0, 1, 1, 2], [0], [0]>} : vector<2x8x8xf32>, vector<2x8x16xf32>, vector<2x8x16xf32> -> vector<2x8x16xf32>
    "tpu.trace_stop"() : () -> ()
    %82 = vector.extract_strided_slice %60 {offsets = [0, 0, 16], sizes = [2, 8, 16], strides = [1, 1, 1]} : vector<2x8x64xf32> to vector<2x8x16xf32>
    %83 = vector.extract_strided_slice %62 {offsets = [0, 0, 16], sizes = [2, 8, 16], strides = [1, 1, 1]} : vector<2x8x64xf32> to vector<2x8x16xf32>
    %84 = vector.extract_strided_slice %64 {offsets = [0, 0, 16], sizes = [2, 8, 16], strides = [1, 1, 1]} : vector<2x8x64xf32> to vector<2x8x16xf32>
    "tpu.trace_start"() <{level = 10 : i32, message = "bld,bmd->blm"}> : () -> ()
    %cst_20 = arith.constant dense<0.000000e+00> : vector<2x8x8xf32>
    %85 = tpu.matmul %82, %83, %cst_20 {dimension_numbers = #tpu.dot_dimension_numbers<[2], [2], [1], [1], [0, 0, 0, 1, 1, 1], [0], [0]>} : vector<2x8x16xf32>, vector<2x8x16xf32>, vector<2x8x8xf32> -> vector<2x8x8xf32>
    "tpu.trace_stop"() : () -> ()
    %cst_21 = arith.constant 2.500000e-01 : f32
    %86 = vector.broadcast %cst_21 : f32 to vector<2x8x8xf32>
    %87 = arith.mulf %85, %86 : vector<2x8x8xf32>
    %cst_22 = arith.constant dense<0xFF800000> : vector<2x8xf32>
    %88 = vector.multi_reduction <maximumf>, %87, %cst_22 [2] : vector<2x8x8xf32> to vector<2x8xf32>
    %89 = vector.shape_cast %88 : vector<2x8xf32> to vector<2x8x1xf32>
    %90 = vector.broadcast %89 : vector<2x8x1xf32> to vector<2x8x8xf32>
    %91 = arith.subf %87, %90 : vector<2x8x8xf32>
    %92 = math.exp %91 : vector<2x8x8xf32>
    %cst_23 = arith.constant dense<0.000000e+00> : vector<2x8xf32>
    %93 = vector.multi_reduction <add>, %92, %cst_23 [2] : vector<2x8x8xf32> to vector<2x8xf32>
    %94 = vector.shape_cast %93 : vector<2x8xf32> to vector<2x8x1xf32>
    %95 = tpu.reciprocal %94 {approx = true} : vector<2x8x1xf32> -> vector<2x8x1xf32>
    %96 = vector.broadcast %95 : vector<2x8x1xf32> to vector<2x8x8xf32>
    %97 = arith.mulf %92, %96 : vector<2x8x8xf32>
    "tpu.trace_start"() <{level = 10 : i32, message = "blm,bmd->bld"}> : () -> ()
    %cst_24 = arith.constant dense<0.000000e+00> : vector<2x8x16xf32>
    %98 = tpu.matmul %97, %84, %cst_24 {dimension_numbers = #tpu.dot_dimension_numbers<[2], [1], [1], [2], [0, 0, 0, 1, 1, 2], [0], [0]>} : vector<2x8x8xf32>, vector<2x8x16xf32>, vector<2x8x16xf32> -> vector<2x8x16xf32>
    "tpu.trace_stop"() : () -> ()
    %99 = vector.extract_strided_slice %60 {offsets = [0, 0, 32], sizes = [2, 8, 16], strides = [1, 1, 1]} : vector<2x8x64xf32> to vector<2x8x16xf32>
    %100 = vector.extract_strided_slice %62 {offsets = [0, 0, 32], sizes = [2, 8, 16], strides = [1, 1, 1]} : vector<2x8x64xf32> to vector<2x8x16xf32>
    %101 = vector.extract_strided_slice %64 {offsets = [0, 0, 32], sizes = [2, 8, 16], strides = [1, 1, 1]} : vector<2x8x64xf32> to vector<2x8x16xf32>
    "tpu.trace_start"() <{level = 10 : i32, message = "bld,bmd->blm"}> : () -> ()
    %cst_25 = arith.constant dense<0.000000e+00> : vector<2x8x8xf32>
    %102 = tpu.matmul %99, %100, %cst_25 {dimension_numbers = #tpu.dot_dimension_numbers<[2], [2], [1], [1], [0, 0, 0, 1, 1, 1], [0], [0]>} : vector<2x8x16xf32>, vector<2x8x16xf32>, vector<2x8x8xf32> -> vector<2x8x8xf32>
    "tpu.trace_stop"() : () -> ()
    %cst_26 = arith.constant 2.500000e-01 : f32
    %103 = vector.broadcast %cst_26 : f32 to vector<2x8x8xf32>
    %104 = arith.mulf %102, %103 : vector<2x8x8xf32>
    %cst_27 = arith.constant dense<0xFF800000> : vector<2x8xf32>
    %105 = vector.multi_reduction <maximumf>, %104, %cst_27 [2] : vector<2x8x8xf32> to vector<2x8xf32>
    %106 = vector.shape_cast %105 : vector<2x8xf32> to vector<2x8x1xf32>
    %107 = vector.broadcast %106 : vector<2x8x1xf32> to vector<2x8x8xf32>
    %108 = arith.subf %104, %107 : vector<2x8x8xf32>
    %109 = math.exp %108 : vector<2x8x8xf32>
    %cst_28 = arith.constant dense<0.000000e+00> : vector<2x8xf32>
    %110 = vector.multi_reduction <add>, %109, %cst_28 [2] : vector<2x8x8xf32> to vector<2x8xf32>
    %111 = vector.shape_cast %110 : vector<2x8xf32> to vector<2x8x1xf32>
    %112 = tpu.reciprocal %111 {approx = true} : vector<2x8x1xf32> -> vector<2x8x1xf32>
    %113 = vector.broadcast %112 : vector<2x8x1xf32> to vector<2x8x8xf32>
    %114 = arith.mulf %109, %113 : vector<2x8x8xf32>
    "tpu.trace_start"() <{level = 10 : i32, message = "blm,bmd->bld"}> : () -> ()
    %cst_29 = arith.constant dense<0.000000e+00> : vector<2x8x16xf32>
    %115 = tpu.matmul %114, %101, %cst_29 {dimension_numbers = #tpu.dot_dimension_numbers<[2], [1], [1], [2], [0, 0, 0, 1, 1, 2], [0], [0]>} : vector<2x8x8xf32>, vector<2x8x16xf32>, vector<2x8x16xf32> -> vector<2x8x16xf32>
    "tpu.trace_stop"() : () -> ()
    %116 = vector.extract_strided_slice %60 {offsets = [0, 0, 48], sizes = [2, 8, 16], strides = [1, 1, 1]} : vector<2x8x64xf32> to vector<2x8x16xf32>
    %117 = vector.extract_strided_slice %62 {offsets = [0, 0, 48], sizes = [2, 8, 16], strides = [1, 1, 1]} : vector<2x8x64xf32> to vector<2x8x16xf32>
    %118 = vector.extract_strided_slice %64 {offsets = [0, 0, 48], sizes = [2, 8, 16], strides = [1, 1, 1]} : vector<2x8x64xf32> to vector<2x8x16xf32>
    "tpu.trace_start"() <{level = 10 : i32, message = "bld,bmd->blm"}> : () -> ()
    %cst_30 = arith.constant dense<0.000000e+00> : vector<2x8x8xf32>
    %119 = tpu.matmul %116, %117, %cst_30 {dimension_numbers = #tpu.dot_dimension_numbers<[2], [2], [1], [1], [0, 0, 0, 1, 1, 1], [0], [0]>} : vector<2x8x16xf32>, vector<2x8x16xf32>, vector<2x8x8xf32> -> vector<2x8x8xf32>
    "tpu.trace_stop"() : () -> ()
    %cst_31 = arith.constant 2.500000e-01 : f32
    %120 = vector.broadcast %cst_31 : f32 to vector<2x8x8xf32>
    %121 = arith.mulf %119, %120 : vector<2x8x8xf32>
    %cst_32 = arith.constant dense<0xFF800000> : vector<2x8xf32>
    %122 = vector.multi_reduction <maximumf>, %121, %cst_32 [2] : vector<2x8x8xf32> to vector<2x8xf32>
    %123 = vector.shape_cast %122 : vector<2x8xf32> to vector<2x8x1xf32>
    %124 = vector.broadcast %123 : vector<2x8x1xf32> to vector<2x8x8xf32>
    %125 = arith.subf %121, %124 : vector<2x8x8xf32>
    %126 = math.exp %125 : vector<2x8x8xf32>
    %cst_33 = arith.constant dense<0.000000e+00> : vector<2x8xf32>
    %127 = vector.multi_reduction <add>, %126, %cst_33 [2] : vector<2x8x8xf32> to vector<2x8xf32>
    %128 = vector.shape_cast %127 : vector<2x8xf32> to vector<2x8x1xf32>
    %129 = tpu.reciprocal %128 {approx = true} : vector<2x8x1xf32> -> vector<2x8x1xf32>
    %130 = vector.broadcast %129 : vector<2x8x1xf32> to vector<2x8x8xf32>
    %131 = arith.mulf %126, %130 : vector<2x8x8xf32>
    "tpu.trace_start"() <{level = 10 : i32, message = "blm,bmd->bld"}> : () -> ()
    %cst_34 = arith.constant dense<0.000000e+00> : vector<2x8x16xf32>
    %132 = tpu.matmul %131, %118, %cst_34 {dimension_numbers = #tpu.dot_dimension_numbers<[2], [1], [1], [2], [0, 0, 0, 1, 1, 2], [0], [0]>} : vector<2x8x8xf32>, vector<2x8x16xf32>, vector<2x8x16xf32> -> vector<2x8x16xf32>
    "tpu.trace_stop"() : () -> ()
    %133 = tpu.concatenate %81, %98, %115, %132 in 2 : vector<2x8x16xf32>, vector<2x8x16xf32>, vector<2x8x16xf32>, vector<2x8x16xf32> -> vector<2x8x64xf32>
    %134 = vector.shape_cast %133 : vector<2x8x64xf32> to vector<16x64xf32>
    %c0_35 = arith.constant 0 : index
    %c0_36 = arith.constant 0 : index
    %135 = vector.load %arg4[%c0_35, %c0_36] : memref<64x64xf32, #tpu.memory_space<vmem>>, vector<64x64xf32>
    %cst_37 = arith.constant dense<0.000000e+00> : vector<16x64xf32>
    %136 = tpu.matmul %134, %135, %cst_37 {dimension_numbers = #tpu.dot_dimension_numbers<[1], [0], [0], [1], [0, 0, 1, 1], [], []>} : vector<16x64xf32>, vector<64x64xf32>, vector<16x64xf32> -> vector<16x64xf32>
    %137 = vector.broadcast %5 : vector<1x64xf32> to vector<16x64xf32>
    %138 = arith.addf %136, %137 : vector<16x64xf32>
    %139 = arith.addf %54, %138 : vector<16x64xf32>
    %cst_38 = arith.constant dense<0.000000e+00> : vector<16xf32>
    %140 = vector.multi_reduction <add>, %139, %cst_38 [1] : vector<16x64xf32> to vector<16xf32>
    %141 = vector.shape_cast %140 : vector<16xf32> to vector<16x1xf32>
    %cst_39 = arith.constant 6.400000e+01 : f32
    %142 = vector.broadcast %cst_39 : f32 to vector<16x1xf32>
    %143 = arith.divf %141, %142 : vector<16x1xf32>
    %144 = vector.broadcast %143 : vector<16x1xf32> to vector<16x64xf32>
    %145 = arith.subf %139, %144 : vector<16x64xf32>
    %146 = arith.mulf %145, %145 : vector<16x64xf32>
    %cst_40 = arith.constant dense<0.000000e+00> : vector<16xf32>
    %147 = vector.multi_reduction <add>, %146, %cst_40 [1] : vector<16x64xf32> to vector<16xf32>
    %148 = vector.shape_cast %147 : vector<16xf32> to vector<16x1xf32>
    %cst_41 = arith.constant 6.400000e+01 : f32
    %149 = vector.broadcast %cst_41 : f32 to vector<16x1xf32>
    %150 = arith.divf %148, %149 : vector<16x1xf32>
    %151 = vector.broadcast %143 : vector<16x1xf32> to vector<16x64xf32>
    %152 = arith.subf %139, %151 : vector<16x64xf32>
    %cst_42 = arith.constant 9.99999974E-6 : f32
    %153 = vector.broadcast %cst_42 : f32 to vector<16x1xf32>
    %154 = arith.addf %150, %153 : vector<16x1xf32>
    %155 = math.rsqrt %154 : vector<16x1xf32>
    %156 = vector.broadcast %155 : vector<16x1xf32> to vector<16x64xf32>
    %157 = arith.mulf %152, %156 : vector<16x64xf32>
    %158 = vector.broadcast %6 : vector<1x64xf32> to vector<16x64xf32>
    %159 = arith.mulf %157, %158 : vector<16x64xf32>
    %160 = vector.broadcast %7 : vector<1x64xf32> to vector<16x64xf32>
    %161 = arith.addf %159, %160 : vector<16x64xf32>
    %c0_43 = arith.constant 0 : index
    %c0_44 = arith.constant 0 : index
    %162 = vector.load %arg5[%c0_43, %c0_44] : memref<64x256xf32, #tpu.memory_space<vmem>>, vector<64x256xf32>
    %cst_45 = arith.constant dense<0.000000e+00> : vector<16x256xf32>
    %163 = tpu.matmul %161, %162, %cst_45 {dimension_numbers = #tpu.dot_dimension_numbers<[1], [0], [0], [1], [0, 0, 1, 1], [], []>} : vector<16x64xf32>, vector<64x256xf32>, vector<16x256xf32> -> vector<16x256xf32>
    %164 = vector.broadcast %13 : vector<1x256xf32> to vector<16x256xf32>
    %165 = arith.addf %163, %164 : vector<16x256xf32>
    %cst_46 = arith.constant 0.000000e+00 : f32
    %166 = vector.broadcast %cst_46 : f32 to vector<16x256xf32>
    %167 = arith.maximumf %165, %166 : vector<16x256xf32>
    %c0_47 = arith.constant 0 : index
    %c0_48 = arith.constant 0 : index
    %168 = vector.load %arg6[%c0_47, %c0_48] : memref<256x64xf32, #tpu.memory_space<vmem>>, vector<256x64xf32>
    %cst_49 = arith.constant dense<0.000000e+00> : vector<16x64xf32>
    %169 = tpu.matmul %167, %168, %cst_49 {dimension_numbers = #tpu.dot_dimension_numbers<[1], [0], [0], [1], [0, 0, 1, 1], [], []>} : vector<16x256xf32>, vector<256x64xf32>, vector<16x64xf32> -> vector<16x64xf32>
    %170 = vector.broadcast %8 : vector<1x64xf32> to vector<16x64xf32>
    %171 = arith.addf %169, %170 : vector<16x64xf32>
    %172 = arith.addf %161, %171 : vector<16x64xf32>
    %cst_50 = arith.constant dense<0.000000e+00> : vector<16xf32>
    %173 = vector.multi_reduction <add>, %172, %cst_50 [1] : vector<16x64xf32> to vector<16xf32>
    %174 = vector.shape_cast %173 : vector<16xf32> to vector<16x1xf32>
    %cst_51 = arith.constant 6.400000e+01 : f32
    %175 = vector.broadcast %cst_51 : f32 to vector<16x1xf32>
    %176 = arith.divf %174, %175 : vector<16x1xf32>
    %177 = vector.broadcast %176 : vector<16x1xf32> to vector<16x64xf32>
    %178 = arith.subf %172, %177 : vector<16x64xf32>
    %179 = arith.mulf %178, %178 : vector<16x64xf32>
    %cst_52 = arith.constant dense<0.000000e+00> : vector<16xf32>
    %180 = vector.multi_reduction <add>, %179, %cst_52 [1] : vector<16x64xf32> to vector<16xf32>
    %181 = vector.shape_cast %180 : vector<16xf32> to vector<16x1xf32>
    %cst_53 = arith.constant 6.400000e+01 : f32
    %182 = vector.broadcast %cst_53 : f32 to vector<16x1xf32>
    %183 = arith.divf %181, %182 : vector<16x1xf32>
    %184 = vector.broadcast %176 : vector<16x1xf32> to vector<16x64xf32>
    %185 = arith.subf %172, %184 : vector<16x64xf32>
    %cst_54 = arith.constant 9.99999974E-6 : f32
    %186 = vector.broadcast %cst_54 : f32 to vector<16x1xf32>
    %187 = arith.addf %183, %186 : vector<16x1xf32>
    %188 = math.rsqrt %187 : vector<16x1xf32>
    %189 = vector.broadcast %188 : vector<16x1xf32> to vector<16x64xf32>
    %190 = arith.mulf %185, %189 : vector<16x64xf32>
    %191 = vector.broadcast %9 : vector<1x64xf32> to vector<16x64xf32>
    %192 = arith.mulf %190, %191 : vector<16x64xf32>
    %193 = vector.broadcast %10 : vector<1x64xf32> to vector<16x64xf32>
    %194 = arith.addf %192, %193 : vector<16x64xf32>
    %195 = vector.shape_cast %194 : vector<16x64xf32> to vector<2x8x64xf32>
    %196 = vector.extract_strided_slice %195 {offsets = [0, 7, 0], sizes = [2, 1, 64], strides = [1, 1, 1]} : vector<2x8x64xf32> to vector<2x1x64xf32>
    %197 = vector.shape_cast %196 : vector<2x1x64xf32> to vector<2x64xf32>
    %c0_55 = arith.constant 0 : index
    %c0_56 = arith.constant 0 : index
    %198 = vector.load %arg7[%c0_55, %c0_56] : memref<64x128xf32, #tpu.memory_space<vmem>>, vector<64x128xf32>
    %cst_57 = arith.constant dense<0.000000e+00> : vector<2x128xf32>
    %199 = tpu.matmul %197, %198, %cst_57 {dimension_numbers = #tpu.dot_dimension_numbers<[1], [0], [0], [1], [0, 0, 1, 1], [], []>} : vector<2x64xf32>, vector<64x128xf32>, vector<2x128xf32> -> vector<2x128xf32>
    %200 = vector.broadcast %14 : vector<1x128xf32> to vector<2x128xf32>
    %201 = arith.addf %199, %200 : vector<2x128xf32>
    %c0_58 = arith.constant 0 : index
    %c0_59 = arith.constant 0 : index
    %202 = vector.load %arg10[%c0_58, %c0_59] : memref<2x128xf32, #tpu.memory_space<vmem>>, vector<2x128xf32>
    tpu.vector_store %arg10[%c0_58, %c0_59], %201 {strides = array<i32>} : memref<2x128xf32, #tpu.memory_space<vmem>>, vector<2x128xf32>,
    return
  }
  func.func @transform_0(%arg0: i32) -> (i32, i32, i32) {
    %c0_i32 = arith.constant 0 : i32
    %c0_i32_0 = arith.constant 0 : i32
    %c0_i32_1 = arith.constant 0 : i32
    return %arg0, %c0_i32, %c0_i32_0 : i32, i32, i32
  }
  func.func @transform_1(%arg0: i32) -> (i32, i32) {
    %c0_i32 = arith.constant 0 : i32
    %c0_i32_0 = arith.constant 0 : i32
    %c0_i32_1 = arith.constant 0 : i32
    return %c0_i32, %c0_i32_0 : i32, i32
  }
  func.func @transform_2(%arg0: i32) -> (i32, i32) {
    %c0_i32 = arith.constant 0 : i32
    %c0_i32_0 = arith.constant 0 : i32
    %c0_i32_1 = arith.constant 0 : i32
    return %c0_i32, %c0_i32_0 : i32, i32
  }
  func.func @transform_3(%arg0: i32) -> (i32, i32) {
    %c0_i32 = arith.constant 0 : i32
    %c0_i32_0 = arith.constant 0 : i32
    %c0_i32_1 = arith.constant 0 : i32
    return %c0_i32, %c0_i32_0 : i32, i32
  }
  func.func @transform_4(%arg0: i32) -> (i32, i32) {
    %c0_i32 = arith.constant 0 : i32
    %c0_i32_0 = arith.constant 0 : i32
    %c0_i32_1 = arith.constant 0 : i32
    return %c0_i32, %c0_i32_0 : i32, i32
  }
  func.func @transform_5(%arg0: i32) -> (i32, i32) {
    %c0_i32 = arith.constant 0 : i32
    %c0_i32_0 = arith.constant 0 : i32
    %c0_i32_1 = arith.constant 0 : i32
    return %c0_i32, %c0_i32_0 : i32, i32
  }
  func.func @transform_6(%arg0: i32) -> (i32, i32) {
    %c0_i32 = arith.constant 0 : i32
    %c0_i32_0 = arith.constant 0 : i32
    %c0_i32_1 = arith.constant 0 : i32
    return %c0_i32, %c0_i32_0 : i32, i32
  }
  func.func @transform_7(%arg0: i32) -> (i32, i32) {
    %c0_i32 = arith.constant 0 : i32
    %c0_i32_0 = arith.constant 0 : i32
    %c0_i32_1 = arith.constant 0 : i32
    return %c0_i32, %c0_i32_0 : i32, i32
  }
  func.func @transform_8(%arg0: i32) -> (i32, i32) {
    %c0_i32 = arith.constant 0 : i32
    %c0_i32_0 = arith.constant 0 : i32
    %c0_i32_1 = arith.constant 0 : i32
    return %c0_i32, %c0_i32_0 : i32, i32
  }
  func.func @transform_9(%arg0: i32) -> (i32, i32) {
    %c0_i32 = arith.constant 0 : i32
    %c0_i32_0 = arith.constant 0 : i32
    return %arg0, %c0_i32 : i32, i32
  }
}

</mosaic_0001>

<llo_original>
// kernel: tpu_custom_call.1
$region0: #{tpu_custom_call.1}
  #allocation0 [shape = 'u32[]', space=smem, size = 0x4, offset = 0x4, fixed_abs, tag = 'smem constant byte address 0x4 - core index']
  #allocation1 [shape = 'u32[72,128]{1,0:T(1,128)}', space=vmem, size = 0x9000, scoped, tag = 'internal scratch']
  %s0 = inlined_call_operand.hbm [shape: f32[2,8,16], index: 0, kind: input, shape index: {}]
  %s1 = inlined_call_operand.hbm [shape: f32[16,64], index: 1, kind: input, shape index: {}]
  %s2 = inlined_call_operand.vmem [shape: f32[64,192], index: 2, kind: input, shape index: {}]
  %s3 = inlined_call_operand.vmem [shape: f32[64,64], index: 3, kind: input, shape index: {}]
  %s4 = inlined_call_operand.vmem [shape: f32[64,256], index: 4, kind: input, shape index: {}]
  %s5 = inlined_call_operand.vmem [shape: f32[256,64], index: 5, kind: input, shape index: {}]
  %s6 = inlined_call_operand.vmem [shape: f32[64,128], index: 6, kind: input, shape index: {}]
  %s7 = inlined_call_operand.hbm [shape: f32[10,64], index: 7, kind: input, shape index: {}]
  %s8 = inlined_call_operand.hbm [shape: f32[3,256], index: 8, kind: input, shape index: {}]
  %s9 = inlined_call_operand.hbm [shape: f32[2,128], index: 9, kind: output, shape index: {}]
  %s10 = sld [smem:[#allocation0]]
  $region62: #{tpu_custom_call.1} parent=0
    _
  %s12 = ssub.s32 1, %s10
  %s13 = scalar_select 0, %s12, %s10
  $region1: #{tpu_custom_call.1} parent=0
    #allocation2 [shape = 'u8[8192]{0}', space=vmem, size = 0x2000, scoped, tag = 'input window, operand 0, single buffered']
    #allocation3 [shape = 's32[1]{0}', space=sflag, size = 0x4, scoped, tag = 'scoped memory for tpu_custom_call.1']
    #allocation4 [shape = 's32[1]{0}', space=sflag, size = 0x4, scoped, tag = 'scoped memory for tpu_custom_call.1']
    #allocation5 [shape = 'u8[8192]{0}', space=vmem, size = 0x2000, scoped, tag = 'input window, operand 1, single buffered']
    #allocation6 [shape = 's32[1]{0}', space=sflag, size = 0x4, scoped, tag = 'scoped memory for tpu_custom_call.1']
    #allocation7 [shape = 'u8[8192]{0}', space=vmem, size = 0x2000, scoped, tag = 'input window, operand 7, single buffered']
    #allocation8 [shape = 'u8[4096]{0}', space=vmem, size = 0x1000, scoped, tag = 'input window, operand 8, single buffered']
    #allocation9 [shape = 's32[1]{0}', space=sflag, size = 0x4, scoped, tag = 'scoped memory for tpu_custom_call.1']
    #allocation10 [shape = 'u8[1024]{0}', space=vmem, size = 0x400, scoped, tag = 'output window, operand 0, single buffered']
    %14 = vsyncpa [#allocation3], 0
    %15 = vsyncpa [#allocation6], 0
    %16 = vsyncpa [#allocation9], 0
    %17 = vsyncpa [#allocation4], 0
    // Predicated region
    $region2: #{tpu_custom_call.1} parent=1 // pred_check
      _
    $region3: #{tpu_custom_call.1} parent=1 // pred_check_branch
      %19 = sbr.rel (0) target = $region5
    $region4: #{tpu_custom_call.1} parent=1 // pred_region
      %21 = vsyncadd [#allocation3], 0
      %s22 = sshll.u32 %s0, 4
      %s23 = int_to_ptr.hbm [resolvable:$true] %s22
      %s24 = sshll.u32 [#allocation2], 4
      %s25 = int_to_ptr.vmem [resolvable:$true] %s24
      %30 = dma.hbm_to_vmem [thread:$0]  %s23, 256, %s25, [#allocation3], 128, 128, 8
    $region5: #{tpu_custom_call.1} parent=1 // pred_fallthru
      _
    // Predicated region
    $region6: #{tpu_custom_call.1} parent=1 // pred_check
      _
    $region7: #{tpu_custom_call.1} parent=1 // pred_check_branch
      %32 = sbr.rel (0) target = $region9
    $region8: #{tpu_custom_call.1} parent=1 // pred_region
      %34 = vsyncadd [#allocation6], 0
      %s35 = sshll.u32 %s1, 4
      %s36 = int_to_ptr.hbm [resolvable:$true] %s35
      %s37 = sshll.u32 [#allocation5], 4
      %s38 = int_to_ptr.vmem [resolvable:$true] %s37
      %43 = dma.hbm_to_vmem [thread:$0]  %s36, 256, %s38, [#allocation6], 128, 128, 8
    $region9: #{tpu_custom_call.1} parent=1 // pred_fallthru
      _
    // Predicated region
    $region10: #{tpu_custom_call.1} parent=1 // pred_check
      _
    $region11: #{tpu_custom_call.1} parent=1 // pred_check_branch
      %45 = sbr.rel (0) target = $region13
    $region12: #{tpu_custom_call.1} parent=1 // pred_region
      _
    $region13: #{tpu_custom_call.1} parent=1 // pred_fallthru
      _
    // Predicated region
    $region14: #{tpu_custom_call.1} parent=1 // pred_check
      _
    $region15: #{tpu_custom_call.1} parent=1 // pred_check_branch
      %47 = sbr.rel (0) target = $region17
    $region16: #{tpu_custom_call.1} parent=1 // pred_region
      _
    $region17: #{tpu_custom_call.1} parent=1 // pred_fallthru
      _
    // Predicated region
    $region18: #{tpu_custom_call.1} parent=1 // pred_check
      _
    $region19: #{tpu_custom_call.1} parent=1 // pred_check_branch
      %49 = sbr.rel (0) target = $region21
    $region20: #{tpu_custom_call.1} parent=1 // pred_region
      _
    $region21: #{tpu_custom_call.1} parent=1 // pred_fallthru
      _
    // Predicated region
    $region22: #{tpu_custom_call.1} parent=1 // pred_check
      _
    $region23: #{tpu_custom_call.1} parent=1 // pred_check_branch
      %51 = sbr.rel (0) target = $region25
    $region24: #{tpu_custom_call.1} parent=1 // pred_region
      _
    $region25: #{tpu_custom_call.1} parent=1 // pred_fallthru
      _
    // Predicated region
    $region26: #{tpu_custom_call.1} parent=1 // pred_check
      _
    $region27: #{tpu_custom_call.1} parent=1 // pred_check_branch
      %53 = sbr.rel (0) target = $region29
    $region28: #{tpu_custom_call.1} parent=1 // pred_region
      _
    $region29: #{tpu_custom_call.1} parent=1 // pred_fallthru
      _
    // Predicated region
    $region30: #{tpu_custom_call.1} parent=1 // pred_check
      _
    $region31: #{tpu_custom_call.1} parent=1 // pred_check_branch
      %55 = sbr.rel (0) target = $region33
    $region32: #{tpu_custom_call.1} parent=1 // pred_region
      %57 = vsyncadd [#allocation6], 0
      %s58 = sshll.u32 %s7, 4
      %s59 = int_to_ptr.hbm [resolvable:$true] %s58
      %s60 = sshll.u32 [#allocation7], 4
      %s61 = int_to_ptr.vmem [resolvable:$true] %s60
      %66 = dma.hbm_to_vmem [thread:$0]  %s59, 256, %s61, [#allocation6], 128, 128, 8
    $region33: #{tpu_custom_call.1} parent=1 // pred_fallthru
      _
    // Predicated region
    $region34: #{tpu_custom_call.1} parent=1 // pred_check
      _
    $region35: #{tpu_custom_call.1} parent=1 // pred_check_branch
      %68 = sbr.rel (0) target = $region37
    $region36: #{tpu_custom_call.1} parent=1 // pred_region
      %70 = vsyncadd [#allocation9], 0
      %s72 = sshll.u32 %s8, 4
      %s73 = int_to_ptr.hbm [resolvable:$true] %s72
      %s74 = sshll.u32 [#allocation8], 4
      %s75 = int_to_ptr.vmem [resolvable:$true] %s74
      %77 = dma.hbm_to_vmem [thread:$0]  %s73, 128, %s75, [#allocation9]
    $region37: #{tpu_custom_call.1} parent=1 // pred_fallthru
      _
    // Predicated region
    $region38: #{tpu_custom_call.1} parent=1 // pred_check
      _
    $region39: #{tpu_custom_call.1} parent=1 // pred_check_branch
      %79 = sbr.rel (0) target = $region41
    $region40: #{tpu_custom_call.1} parent=1 // pred_region
      %81 = dma.done [#allocation3], 256
    $region41: #{tpu_custom_call.1} parent=1 // pred_fallthru
      _
    // Predicated region
    $region42: #{tpu_custom_call.1} parent=1 // pred_check
      _
    $region43: #{tpu_custom_call.1} parent=1 // pred_check_branch
      %83 = sbr.rel (0) target = $region45
    $region44: #{tpu_custom_call.1} parent=1 // pred_region
      %85 = dma.done [#allocation6], 256
    $region45: #{tpu_custom_call.1} parent=1 // pred_fallthru
      _
    // Predicated region
    $region46: #{tpu_custom_call.1} parent=1 // pred_check
      _
    $region47: #{tpu_custom_call.1} parent=1 // pred_check_branch
      %87 = sbr.rel (0) target = $region49
    $region48: #{tpu_custom_call.1} parent=1 // pred_region
      %89 = dma.done [#allocation6], 256
    $region49: #{tpu_custom_call.1} parent=1 // pred_fallthru
      _
    // Predicated region
    $region50: #{tpu_custom_call.1} parent=1 // pred_check
      _
    $region51: #{tpu_custom_call.1} parent=1 // pred_check_branch
      %91 = sbr.rel (0) target = $region53
    $region52: #{tpu_custom_call.1} parent=1 // pred_region
      %93 = dma.done [#allocation9], 128
    $region53: #{tpu_custom_call.1} parent=1 // pred_fallthru
      _
    %v94 = vld [vmem:[#allocation7] sm:$0xff]
    %v95 = vld [vmem:[#allocation7 + $0x8] sm:$0x3]
    %v96 = vld [vmem:[#allocation8] sm:$0x77]
    %v97 = vld [vmem:[#allocation2] sm:$0xff]
    %v98 = vld [vmem:[#allocation2 + $0x8] sm:$0xff]
    %v99 = vld [vmem:[#allocation5] sm:$0xff]
    %v100 = vld [vmem:[#allocation5 + $0x8] sm:$0xff]
    %v101 = vperm.slane %v94, 0
    %vm102 = vcmask 130048
    %v104 = vsel %vm102, %v97, 0
    %v107 = vsel %vm102, %v98, 0
    %109 = vmatpush.msra.mxu0 0.0
    %110 = vmatpush.msra.mxu0 0.0
    %111 = vmatpush.msra.mxu0 0.0
    %112 = vmatpush.msra.mxu0 0.0
    %113 = vmatpush.msra.mxu0 0.0
    %114 = vmatpush.msra.mxu0 0.0
    %115 = vmatpush.msra.mxu0 0.0
    %116 = vmatpush.msra.mxu0 0.0
    %117 = vmatpush.msra.mxu0 0.0
    %118 = vmatpush.msra.mxu0 0.0
    %119 = vmatpush.msra.mxu0 0.0
    %120 = vmatpush.msra.mxu0 0.0
    %121 = vmatpush.msra.mxu0 0.0
    %122 = vmatpush.msra.mxu0 0.0
    %123 = vmatpush.msra.mxu0 %v100
    %124 = vmatpush.msra.mxu0 %v99
    %125 = vmatmul.f32.gmra.mxu0 %v104
    %v126 = vpop.f32.mrf.mxu0
    %v127 = vadd.f32 %v101, %v126
    %128 = vmatmul.f32.gmra.mxu0 %v107
    %v129 = vpop.f32.mrf.mxu0
    %v130 = vadd.f32 %v101, %v129
    %131 = vdwg.mxu0
    %v132 = vlaneseq
    %v133 = vshrl.u32 %v132, 7
    %v134 = vadd.s32 %v133, 8
    %vm135 = vcmp.lt.s32.totalorder %v133, 0
    %v136 = vsub.s32 0, %v133
    %v137 = vsel %vm135, %v136, %v133
    %v138 = vshrl.u32 %v137, 3
    %v139 = vand.u32 %v137, 7
    %v140 = vsub.s32 0, %v139
    %v141 = vsel %vm135, %v140, %v139
    %vm142 = vcmp.lt.s32.totalorder %v134, 0
    %v143 = vsub.s32 0, %v134
    %v144 = vsel %vm142, %v143, %v134
    %v145 = vshrl.u32 %v144, 3
    %v146 = vand.u32 %v144, 7
    %v147 = vsub.s32 0, %v146
    %v148 = vsel %vm142, %v147, %v146
    %vm149 = vcmp.ne.s32.totalorder %v141, 0
    %vm150 = vcmp.ne.s32.totalorder %v148, 0
    %vm151 = vcmp.lt.s32.totalorder %v141, 0
    %vm152 = vcmp.lt.s32.totalorder %v148, 0
    %vm153 = vmand %vm151, %vm149
    %vm154 = vmand %vm152, %vm150
    %v155 = vadd.s32 %v141, 8
    %v156 = vadd.s32 %v148, 8
    %v157 = vsel %vm153, %v155, %v141
    %v158 = vsel %vm154, %v156, %v148
    %vm159 = vcmp.eq.s32.totalorder %v157, 7
    %vm160 = vcmp.eq.s32.totalorder %v158, 7
    %vm161 = vcmp.eq.s32.totalorder %v157, 0
    %vm162 = vcmp.eq.s32.totalorder %v158, 0
    %v163 = vsel %vm161, 1, 0
    %v164 = vsel %vm162, 1, 0
    %vm165 = vcmp.eq.s32.totalorder %v163, 1
    %vm166 = vcmp.eq.s32.totalorder %v164, 1
    %v167 = vperm.slane %v94, 1
    %v168 = vperm.slane %v94, 2
    %v169 = vsel %vm165, %v167, %v168
    %v170 = vsel %vm166, %v167, %v168
    %v171 = vadd.f32 %v127, %v169
    %v172 = vadd.f32 %v130, %v170
    %v173 = vsel %vm159, 1, 0
    %v174 = vsel %vm160, 1, 0
    %vm175 = vcmp.eq.s32.totalorder %v173, 1
    %vm176 = vcmp.eq.s32.totalorder %v174, 1
    %v177 = vperm.slane %v94, 3
    %v178 = vsel %vm175, %v177, %v171
    %v179 = vsel %vm176, %v177, %v172
    %v180 = vld [vmem:[%s2] sm:$0xff]
    %v181 = vld [vmem:[%s2 + $0x8] sm:$0xff]
    %v182 = vld [vmem:[%s2 + $0x10] sm:$0xff]
    %v183 = vld [vmem:[%s2 + $0x18] sm:$0xff]
    %v184 = vld [vmem:[%s2 + $0x20] sm:$0xff]
    %v185 = vld [vmem:[%s2 + $0x28] sm:$0xff]
    %v186 = vld [vmem:[%s2 + $0x30] sm:$0xff]
    %v187 = vld [vmem:[%s2 + $0x38] sm:$0xff]
    %v188 = vld [vmem:[%s2 + $0x40] sm:$0xff]
    %v189 = vld [vmem:[%s2 + $0x48] sm:$0xff]
    %v190 = vld [vmem:[%s2 + $0x50] sm:$0xff]
    %v191 = vld [vmem:[%s2 + $0x58] sm:$0xff]
    %v192 = vld [vmem:[%s2 + $0x60] sm:$0xff]
    %v193 = vld [vmem:[%s2 + $0x68] sm:$0xff]
    %v194 = vld [vmem:[%s2 + $0x70] sm:$0xff]
    %v195 = vld [vmem:[%s2 + $0x78] sm:$0xff]
    %v197 = vperm.slane %v96, 0
    %v198 = vperm.slane %v96, 4
    %v201 = vperm.slane %v197, 0
    %v202 = vperm.slane %v198, 0
    %vm203 = vcmask 523264
    %v205 = vsel %vm203, %v178, 0
    %v208 = vsel %vm203, %v179, 0
    %210 = vmatpush.msra.mxu0 0.0
    %211 = vmatpush.msra.mxu0 0.0
    %212 = vmatpush.msra.mxu0 0.0
    %213 = vmatpush.msra.mxu0 0.0
    %214 = vmatpush.msra.mxu0 0.0
    %215 = vmatpush.msra.mxu0 0.0
    %216 = vmatpush.msra.mxu0 0.0
    %217 = vmatpush.msra.mxu0 0.0
    %218 = vmatpush.msra.mxu0 %v194
    %219 = vmatpush.msra.mxu0 %v192
    %220 = vmatpush.msra.mxu0 %v190
    %221 = vmatpush.msra.mxu0 %v188
    %222 = vmatpush.msra.mxu0 %v186
    %223 = vmatpush.msra.mxu0 %v184
    %224 = vmatpush.msra.mxu0 %v182
    %225 = vmatpush.msra.mxu0 %v180
    %226 = vmatmul.f32.gmra.mxu0 %v205
    %v227 = vpop.f32.mrf.mxu0
    %v228 = vadd.f32 %v201, %v227
    %229 = vmatmul.f32.gmra.mxu0 %v208
    %v230 = vpop.f32.mrf.mxu0
    %v231 = vadd.f32 %v201, %v230
    %232 = vdwg.mxu0
    %233 = vmatpush.msra.mxu0 0.0
    %234 = vmatpush.msra.mxu0 0.0
    %235 = vmatpush.msra.mxu0 0.0
    %236 = vmatpush.msra.mxu0 0.0
    %237 = vmatpush.msra.mxu0 0.0
    %238 = vmatpush.msra.mxu0 0.0
    %239 = vmatpush.msra.mxu0 0.0
    %240 = vmatpush.msra.mxu0 0.0
    %241 = vmatpush.msra.mxu0 %v195
    %242 = vmatpush.msra.mxu0 %v193
    %243 = vmatpush.msra.mxu0 %v191
    %244 = vmatpush.msra.mxu0 %v189
    %245 = vmatpush.msra.mxu0 %v187
    %246 = vmatpush.msra.mxu0 %v185
    %247 = vmatpush.msra.mxu0 %v183
    %248 = vmatpush.msra.mxu0 %v181
    %249 = vmatmul.f32.gmra.mxu0 %v205
    %v250 = vpop.f32.mrf.mxu0
    %v251 = vadd.f32 %v202, %v250
    %252 = vmatmul.f32.gmra.mxu0 %v208
    %v253 = vpop.f32.mrf.mxu0
    %v254 = vadd.f32 %v202, %v253
    %255 = vdwg.mxu0
    %257 = vrot.lane.b32.xlu0 %v228, 64
    %v258 = vpop.permute.xlu0 %257
    %v259 = vsel %vm102, %v228, 0
    %v261 = vsel %vm102, %v258, 0
    %263 = vmatpush.xpose.msra.mxu0 0.0
    %264 = vmatpush.xpose.msra.mxu0 0.0
    %265 = vmatpush.xpose.msra.mxu0 0.0
    %266 = vmatpush.xpose.msra.mxu0 0.0
    %267 = vmatpush.xpose.msra.mxu0 0.0
    %268 = vmatpush.xpose.msra.mxu0 0.0
    %269 = vmatpush.xpose.msra.mxu0 0.0
    %270 = vmatpush.xpose.msra.mxu0 0.0
    %271 = vmatpush.xpose.msra.mxu0 0.0
    %272 = vmatpush.xpose.msra.mxu0 0.0
    %273 = vmatpush.xpose.msra.mxu0 0.0
    %274 = vmatpush.xpose.msra.mxu0 0.0
    %275 = vmatpush.xpose.msra.mxu0 0.0
    %276 = vmatpush.xpose.msra.mxu0 0.0
    %277 = vmatpush.xpose.msra.mxu0 0.0
    %278 = vmatpush.xpose.msra.mxu0 %v261
    %279 = vmatmul.f32.gmra.mxu0 %v259
    %v280 = vpop.f32.mrf.mxu0
    %v281 = vadd.f32 0.0, %v280
    %282 = vdwg.mxu0
    %284 = vrot.lane.b32.xlu0 %v231, 64
    %v285 = vpop.permute.xlu0 %284
    %v286 = vsel %vm102, %v231, 0
    %v288 = vsel %vm102, %v285, 0
    %290 = vmatpush.xpose.msra.mxu0 0.0
    %291 = vmatpush.xpose.msra.mxu0 0.0
    %292 = vmatpush.xpose.msra.mxu0 0.0
    %293 = vmatpush.xpose.msra.mxu0 0.0
    %294 = vmatpush.xpose.msra.mxu0 0.0
    %295 = vmatpush.xpose.msra.mxu0 0.0
    %296 = vmatpush.xpose.msra.mxu0 0.0
    %297 = vmatpush.xpose.msra.mxu0 0.0
    %298 = vmatpush.xpose.msra.mxu0 0.0
    %299 = vmatpush.xpose.msra.mxu0 0.0
    %300 = vmatpush.xpose.msra.mxu0 0.0
    %301 = vmatpush.xpose.msra.mxu0 0.0
    %302 = vmatpush.xpose.msra.mxu0 0.0
    %303 = vmatpush.xpose.msra.mxu0 0.0
    %304 = vmatpush.xpose.msra.mxu0 0.0
    %305 = vmatpush.xpose.msra.mxu0 %v288
    %306 = vmatmul.f32.gmra.mxu0 %v286
    %v307 = vpop.f32.mrf.mxu0
    %v308 = vadd.f32 0.0, %v307
    %309 = vdwg.mxu0
    %v310 = vmul.f32 %v281, 0.25
    %v311 = vmul.f32 %v308, 0.25
    %vm312 = vcmask 64512
    %v313 = vsel %vm312, %v310, -inf
    %314 = vmax.xlane.f32.xlu0 %v313
    %v315 = vpop.xlane.xlu0 %314
    %v316 = vsel %vm312, %v311, -inf
    %317 = vmax.xlane.f32.xlu0 %v316
    %v318 = vpop.xlane.xlu0 %317
    %v319 = vsub.f32 %v310, %v315
    %v320 = vsub.f32 %v311, %v318
    %v321 = vmul.f32 %v319, 1.442695
    %v322 = vpow.pop %v321
    %v323 = vmul.f32 %v320, 1.442695
    %v324 = vpow.pop %v323
    %v325 = vsel %vm312, %v322, 0.0
    %326 = vadd.xlane.f32.xlu0 %v325
    %v327 = vpop.xlane.xlu0 %326
    %v328 = vsel %vm312, %v324, 0.0
    %329 = vadd.xlane.f32.xlu0 %v328
    %v330 = vpop.xlane.xlu0 %329
    %v331 = vrcp.pop %v327
    %v332 = vrcp.pop %v330
    %v333 = vmul.f32 %v322, %v331
    %v334 = vmul.f32 %v324, %v332
    %v336 = vsel %vm312, %v333, 0
    %338 = vmatpush.msra.mxu0 0.0
    %339 = vmatpush.msra.mxu0 0.0
    %340 = vmatpush.msra.mxu0 0.0
    %341 = vmatpush.msra.mxu0 0.0
    %342 = vmatpush.msra.mxu0 0.0
    %343 = vmatpush.msra.mxu0 0.0
    %344 = vmatpush.msra.mxu0 0.0
    %345 = vmatpush.msra.mxu0 0.0
    %346 = vmatpush.msra.mxu0 0.0
    %347 = vmatpush.msra.mxu0 0.0
    %348 = vmatpush.msra.mxu0 0.0
    %349 = vmatpush.msra.mxu0 0.0
    %350 = vmatpush.msra.mxu0 0.0
    %351 = vmatpush.msra.mxu0 0.0
    %352 = vmatpush.msra.mxu0 0.0
    %353 = vmatpush.msra.mxu0 %v251
    %354 = vmatmul.f32.gmra.mxu0 %v336
    %v355 = vpop.f32.mrf.mxu0
    %v356 = vadd.f32 0.0, %v355
    %357 = vdwg.mxu0
    %v359 = vsel %vm312, %v334, 0
    %361 = vmatpush.msra.mxu0 0.0
    %362 = vmatpush.msra.mxu0 0.0
    %363 = vmatpush.msra.mxu0 0.0
    %364 = vmatpush.msra.mxu0 0.0
    %365 = vmatpush.msra.mxu0 0.0
    %366 = vmatpush.msra.mxu0 0.0
    %367 = vmatpush.msra.mxu0 0.0
    %368 = vmatpush.msra.mxu0 0.0
    %369 = vmatpush.msra.mxu0 0.0
    %370 = vmatpush.msra.mxu0 0.0
    %371 = vmatpush.msra.mxu0 0.0
    %372 = vmatpush.msra.mxu0 0.0
    %373 = vmatpush.msra.mxu0 0.0
    %374 = vmatpush.msra.mxu0 0.0
    %375 = vmatpush.msra.mxu0 0.0
    %376 = vmatpush.msra.mxu0 %v254
    %377 = vmatmul.f32.gmra.mxu0 %v359
    %v378 = vpop.f32.mrf.mxu0
    %v379 = vadd.f32 0.0, %v378
    %380 = vdwg.mxu0
    %381 = vrot.lane.b32.xlu0 %v228, 112
    %v382 = vpop.permute.xlu0 %381
    %383 = vrot.lane.b32.xlu0 %v228, 48
    %v384 = vpop.permute.xlu0 %383
    %v385 = vsel %vm102, %v382, 0
    %v387 = vsel %vm102, %v384, 0
    %389 = vmatpush.xpose.msra.mxu0 0.0
    %390 = vmatpush.xpose.msra.mxu0 0.0
    %391 = vmatpush.xpose.msra.mxu0 0.0
    %392 = vmatpush.xpose.msra.mxu0 0.0
    %393 = vmatpush.xpose.msra.mxu0 0.0
    %394 = vmatpush.xpose.msra.mxu0 0.0
    %395 = vmatpush.xpose.msra.mxu0 0.0
    %396 = vmatpush.xpose.msra.mxu0 0.0
    %397 = vmatpush.xpose.msra.mxu0 0.0
    %398 = vmatpush.xpose.msra.mxu0 0.0
    %399 = vmatpush.xpose.msra.mxu0 0.0
    %400 = vmatpush.xpose.msra.mxu0 0.0
    %401 = vmatpush.xpose.msra.mxu0 0.0
    %402 = vmatpush.xpose.msra.mxu0 0.0
    %403 = vmatpush.xpose.msra.mxu0 0.0
    %404 = vmatpush.xpose.msra.mxu0 %v387
    %405 = vmatmul.f32.gmra.mxu0 %v385
    %v406 = vpop.f32.mrf.mxu0
    %v407 = vadd.f32 0.0, %v406
    %408 = vdwg.mxu0
    %409 = vrot.lane.b32.xlu0 %v231, 112
    %v410 = vpop.permute.xlu0 %409
    %411 = vrot.lane.b32.xlu0 %v231, 48
    %v412 = vpop.permute.xlu0 %411
    %v413 = vsel %vm102, %v410, 0
    %v415 = vsel %vm102, %v412, 0
    %417 = vmatpush.xpose.msra.mxu0 0.0
    %418 = vmatpush.xpose.msra.mxu0 0.0
    %419 = vmatpush.xpose.msra.mxu0 0.0
    %420 = vmatpush.xpose.msra.mxu0 0.0
    %421 = vmatpush.xpose.msra.mxu0 0.0
    %422 = vmatpush.xpose.msra.mxu0 0.0
    %423 = vmatpush.xpose.msra.mxu0 0.0
    %424 = vmatpush.xpose.msra.mxu0 0.0
    %425 = vmatpush.xpose.msra.mxu0 0.0
    %426 = vmatpush.xpose.msra.mxu0 0.0
    %427 = vmatpush.xpose.msra.mxu0 0.0
    %428 = vmatpush.xpose.msra.mxu0 0.0
    %429 = vmatpush.xpose.msra.mxu0 0.0
    %430 = vmatpush.xpose.msra.mxu0 0.0
    %431 = vmatpush.xpose.msra.mxu0 0.0
    %432 = vmatpush.xpose.msra.mxu0 %v415
    %433 = vmatmul.f32.gmra.mxu0 %v413
    %v434 = vpop.f32.mrf.mxu0
    %v435 = vadd.f32 0.0, %v434
    %436 = vdwg.mxu0
    %v437 = vmul.f32 %v407, 0.25
    %v438 = vmul.f32 %v435, 0.25
    %v439 = vsel %vm312, %v437, -inf
    %440 = vmax.xlane.f32.xlu0 %v439
    %v441 = vpop.xlane.xlu0 %440
    %v442 = vsel %vm312, %v438, -inf
    %443 = vmax.xlane.f32.xlu0 %v442
    %v444 = vpop.xlane.xlu0 %443
    %v445 = vsub.f32 %v437, %v441
    %v446 = vsub.f32 %v438, %v444
    %v447 = vmul.f32 %v445, 1.442695
    %v448 = vpow.pop %v447
    %v449 = vmul.f32 %v446, 1.442695
    %v450 = vpow.pop %v449
    %v451 = vsel %vm312, %v448, 0.0
    %452 = vadd.xlane.f32.xlu0 %v451
    %v453 = vpop.xlane.xlu0 %452
    %v454 = vsel %vm312, %v450, 0.0
    %455 = vadd.xlane.f32.xlu0 %v454
    %v456 = vpop.xlane.xlu0 %455
    %v457 = vrcp.pop %v453
    %v458 = vrcp.pop %v456
    %v459 = vmul.f32 %v448, %v457
    %v460 = vmul.f32 %v450, %v458
    %462 = vrot.lane.b32.xlu0 %v251, 112
    %v463 = vpop.permute.xlu0 %462
    %v466 = vsel %vm312, %v459, 0
    %468 = vmatpush.msra.mxu0 0.0
    %469 = vmatpush.msra.mxu0 0.0
    %470 = vmatpush.msra.mxu0 0.0
    %471 = vmatpush.msra.mxu0 0.0
    %472 = vmatpush.msra.mxu0 0.0
    %473 = vmatpush.msra.mxu0 0.0
    %474 = vmatpush.msra.mxu0 0.0
    %475 = vmatpush.msra.mxu0 0.0
    %476 = vmatpush.msra.mxu0 0.0
    %477 = vmatpush.msra.mxu0 0.0
    %478 = vmatpush.msra.mxu0 0.0
    %479 = vmatpush.msra.mxu0 0.0
    %480 = vmatpush.msra.mxu0 0.0
    %481 = vmatpush.msra.mxu0 0.0
    %482 = vmatpush.msra.mxu0 0.0
    %483 = vmatpush.msra.mxu0 %v463
    %484 = vmatmul.f32.gmra.mxu0 %v466
    %v485 = vpop.f32.mrf.mxu0
    %v486 = vadd.f32 0.0, %v485
    %487 = vdwg.mxu0
    %489 = vrot.lane.b32.xlu0 %v254, 112
    %v490 = vpop.permute.xlu0 %489
    %v493 = vsel %vm312, %v460, 0
    %495 = vmatpush.msra.mxu0 0.0
    %496 = vmatpush.msra.mxu0 0.0
    %497 = vmatpush.msra.mxu0 0.0
    %498 = vmatpush.msra.mxu0 0.0
    %499 = vmatpush.msra.mxu0 0.0
    %500 = vmatpush.msra.mxu0 0.0
    %501 = vmatpush.msra.mxu0 0.0
    %502 = vmatpush.msra.mxu0 0.0
    %503 = vmatpush.msra.mxu0 0.0
    %504 = vmatpush.msra.mxu0 0.0
    %505 = vmatpush.msra.mxu0 0.0
    %506 = vmatpush.msra.mxu0 0.0
    %507 = vmatpush.msra.mxu0 0.0
    %508 = vmatpush.msra.mxu0 0.0
    %509 = vmatpush.msra.mxu0 0.0
    %510 = vmatpush.msra.mxu0 %v490
    %511 = vmatmul.f32.gmra.mxu0 %v493
    %v512 = vpop.f32.mrf.mxu0
    %v513 = vadd.f32 0.0, %v512
    %514 = vdwg.mxu0
    %515 = vrot.lane.b32.xlu0 %v228, 96
    %v516 = vpop.permute.xlu0 %515
    %517 = vrot.lane.b32.xlu0 %v228, 32
    %v518 = vpop.permute.xlu0 %517
    %v519 = vsel %vm102, %v516, 0
    %v521 = vsel %vm102, %v518, 0
    %523 = vmatpush.xpose.msra.mxu0 0.0
    %524 = vmatpush.xpose.msra.mxu0 0.0
    %525 = vmatpush.xpose.msra.mxu0 0.0
    %526 = vmatpush.xpose.msra.mxu0 0.0
    %527 = vmatpush.xpose.msra.mxu0 0.0
    %528 = vmatpush.xpose.msra.mxu0 0.0
    %529 = vmatpush.xpose.msra.mxu0 0.0
    %530 = vmatpush.xpose.msra.mxu0 0.0
    %531 = vmatpush.xpose.msra.mxu0 0.0
    %532 = vmatpush.xpose.msra.mxu0 0.0
    %533 = vmatpush.xpose.msra.mxu0 0.0
    %534 = vmatpush.xpose.msra.mxu0 0.0
    %535 = vmatpush.xpose.msra.mxu0 0.0
    %536 = vmatpush.xpose.msra.mxu0 0.0
    %537 = vmatpush.xpose.msra.mxu0 0.0
    %538 = vmatpush.xpose.msra.mxu0 %v521
    %539 = vmatmul.f32.gmra.mxu0 %v519
    %v540 = vpop.f32.mrf.mxu0
    %v541 = vadd.f32 0.0, %v540
    %542 = vdwg.mxu0
    %543 = vrot.lane.b32.xlu0 %v231, 96
    %v544 = vpop.permute.xlu0 %543
    %545 = vrot.lane.b32.xlu0 %v231, 32
    %v546 = vpop.permute.xlu0 %545
    %v547 = vsel %vm102, %v544, 0
    %v549 = vsel %vm102, %v546, 0
    %551 = vmatpush.xpose.msra.mxu0 0.0
    %552 = vmatpush.xpose.msra.mxu0 0.0
    %553 = vmatpush.xpose.msra.mxu0 0.0
    %554 = vmatpush.xpose.msra.mxu0 0.0
    %555 = vmatpush.xpose.msra.mxu0 0.0
    %556 = vmatpush.xpose.msra.mxu0 0.0
    %557 = vmatpush.xpose.msra.mxu0 0.0
    %558 = vmatpush.xpose.msra.mxu0 0.0
    %559 = vmatpush.xpose.msra.mxu0 0.0
    %560 = vmatpush.xpose.msra.mxu0 0.0
    %561 = vmatpush.xpose.msra.mxu0 0.0
    %562 = vmatpush.xpose.msra.mxu0 0.0
    %563 = vmatpush.xpose.msra.mxu0 0.0
    %564 = vmatpush.xpose.msra.mxu0 0.0
    %565 = vmatpush.xpose.msra.mxu0 0.0
    %566 = vmatpush.xpose.msra.mxu0 %v549
    %567 = vmatmul.f32.gmra.mxu0 %v547
    %v568 = vpop.f32.mrf.mxu0
    %v569 = vadd.f32 0.0, %v568
    %570 = vdwg.mxu0
    %v571 = vmul.f32 %v541, 0.25
    %v572 = vmul.f32 %v569, 0.25
    %v573 = vsel %vm312, %v571, -inf
    %574 = vmax.xlane.f32.xlu0 %v573
    %v575 = vpop.xlane.xlu0 %574
    %v576 = vsel %vm312, %v572, -inf
    %577 = vmax.xlane.f32.xlu0 %v576
    %v578 = vpop.xlane.xlu0 %577
    %v579 = vsub.f32 %v571, %v575
    %v580 = vsub.f32 %v572, %v578
    %v581 = vmul.f32 %v579, 1.442695
    %v582 = vpow.pop %v581
    %v583 = vmul.f32 %v580, 1.442695
    %v584 = vpow.pop %v583
    %v585 = vsel %vm312, %v582, 0.0
    %586 = vadd.xlane.f32.xlu0 %v585
    %v587 = vpop.xlane.xlu0 %586
    %v588 = vsel %vm312, %v584, 0.0
    %589 = vadd.xlane.f32.xlu0 %v588
    %v590 = vpop.xlane.xlu0 %589
    %v591 = vrcp.pop %v587
    %v592 = vrcp.pop %v590
    %v593 = vmul.f32 %v582, %v591
    %v594 = vmul.f32 %v584, %v592
    %595 = vrot.lane.b32.xlu0 %v251, 96
    %v596 = vpop.permute.xlu0 %595
    %v599 = vsel %vm312, %v593, 0
    %601 = vmatpush.msra.mxu0 0.0
    %602 = vmatpush.msra.mxu0 0.0
    %603 = vmatpush.msra.mxu0 0.0
    %604 = vmatpush.msra.mxu0 0.0
    %605 = vmatpush.msra.mxu0 0.0
    %606 = vmatpush.msra.mxu0 0.0
    %607 = vmatpush.msra.mxu0 0.0
    %608 = vmatpush.msra.mxu0 0.0
    %609 = vmatpush.msra.mxu0 0.0
    %610 = vmatpush.msra.mxu0 0.0
    %611 = vmatpush.msra.mxu0 0.0
    %612 = vmatpush.msra.mxu0 0.0
    %613 = vmatpush.msra.mxu0 0.0
    %614 = vmatpush.msra.mxu0 0.0
    %615 = vmatpush.msra.mxu0 0.0
    %616 = vmatpush.msra.mxu0 %v596
    %617 = vmatmul.f32.gmra.mxu0 %v599
    %v618 = vpop.f32.mrf.mxu0
    %v619 = vadd.f32 0.0, %v618
    %620 = vdwg.mxu0
    %621 = vrot.lane.b32.xlu0 %v254, 96
    %v622 = vpop.permute.xlu0 %621
    %v625 = vsel %vm312, %v594, 0
    %627 = vmatpush.msra.mxu0 0.0
    %628 = vmatpush.msra.mxu0 0.0
    %629 = vmatpush.msra.mxu0 0.0
    %630 = vmatpush.msra.mxu0 0.0
    %631 = vmatpush.msra.mxu0 0.0
    %632 = vmatpush.msra.mxu0 0.0
    %633 = vmatpush.msra.mxu0 0.0
    %634 = vmatpush.msra.mxu0 0.0
    %635 = vmatpush.msra.mxu0 0.0
    %636 = vmatpush.msra.mxu0 0.0
    %637 = vmatpush.msra.mxu0 0.0
    %638 = vmatpush.msra.mxu0 0.0
    %639 = vmatpush.msra.mxu0 0.0
    %640 = vmatpush.msra.mxu0 0.0
    %641 = vmatpush.msra.mxu0 0.0
    %642 = vmatpush.msra.mxu0 %v622
    %643 = vmatmul.f32.gmra.mxu0 %v625
    %v644 = vpop.f32.mrf.mxu0
    %v645 = vadd.f32 0.0, %v644
    %646 = vdwg.mxu0
    %647 = vrot.lane.b32.xlu0 %v228, 80
    %v648 = vpop.permute.xlu0 %647
    %649 = vrot.lane.b32.xlu0 %v228, 16
    %v650 = vpop.permute.xlu0 %649
    %v651 = vsel %vm102, %v648, 0
    %v653 = vsel %vm102, %v650, 0
    %655 = vmatpush.xpose.msra.mxu0 0.0
    %656 = vmatpush.xpose.msra.mxu0 0.0
    %657 = vmatpush.xpose.msra.mxu0 0.0
    %658 = vmatpush.xpose.msra.mxu0 0.0
    %659 = vmatpush.xpose.msra.mxu0 0.0
    %660 = vmatpush.xpose.msra.mxu0 0.0
    %661 = vmatpush.xpose.msra.mxu0 0.0
    %662 = vmatpush.xpose.msra.mxu0 0.0
    %663 = vmatpush.xpose.msra.mxu0 0.0
    %664 = vmatpush.xpose.msra.mxu0 0.0
    %665 = vmatpush.xpose.msra.mxu0 0.0
    %666 = vmatpush.xpose.msra.mxu0 0.0
    %667 = vmatpush.xpose.msra.mxu0 0.0
    %668 = vmatpush.xpose.msra.mxu0 0.0
    %669 = vmatpush.xpose.msra.mxu0 0.0
    %670 = vmatpush.xpose.msra.mxu0 %v653
    %671 = vmatmul.f32.gmra.mxu0 %v651
    %v672 = vpop.f32.mrf.mxu0
    %v673 = vadd.f32 0.0, %v672
    %674 = vdwg.mxu0
    %675 = vrot.lane.b32.xlu0 %v231, 80
    %v676 = vpop.permute.xlu0 %675
    %677 = vrot.lane.b32.xlu0 %v231, 16
    %v678 = vpop.permute.xlu0 %677
    %v679 = vsel %vm102, %v676, 0
    %v681 = vsel %vm102, %v678, 0
    %683 = vmatpush.xpose.msra.mxu0 0.0
    %684 = vmatpush.xpose.msra.mxu0 0.0
    %685 = vmatpush.xpose.msra.mxu0 0.0
    %686 = vmatpush.xpose.msra.mxu0 0.0
    %687 = vmatpush.xpose.msra.mxu0 0.0
    %688 = vmatpush.xpose.msra.mxu0 0.0
    %689 = vmatpush.xpose.msra.mxu0 0.0
    %690 = vmatpush.xpose.msra.mxu0 0.0
    %691 = vmatpush.xpose.msra.mxu0 0.0
    %692 = vmatpush.xpose.msra.mxu0 0.0
    %693 = vmatpush.xpose.msra.mxu0 0.0
    %694 = vmatpush.xpose.msra.mxu0 0.0
    %695 = vmatpush.xpose.msra.mxu0 0.0
    %696 = vmatpush.xpose.msra.mxu0 0.0
    %697 = vmatpush.xpose.msra.mxu0 0.0
    %698 = vmatpush.xpose.msra.mxu0 %v681
    %699 = vmatmul.f32.gmra.mxu0 %v679
    %v700 = vpop.f32.mrf.mxu0
    %v701 = vadd.f32 0.0, %v700
    %702 = vdwg.mxu0
    %v703 = vmul.f32 %v673, 0.25
    %v704 = vmul.f32 %v701, 0.25
    %v705 = vsel %vm312, %v703, -inf
    %706 = vmax.xlane.f32.xlu0 %v705
    %v707 = vpop.xlane.xlu0 %706
    %v708 = vsel %vm312, %v704, -inf
    %709 = vmax.xlane.f32.xlu0 %v708
    %v710 = vpop.xlane.xlu0 %709
    %v711 = vsub.f32 %v703, %v707
    %v712 = vsub.f32 %v704, %v710
    %v713 = vmul.f32 %v711, 1.442695
    %v714 = vpow.pop %v713
    %v715 = vmul.f32 %v712, 1.442695
    %v716 = vpow.pop %v715
    %v717 = vsel %vm312, %v714, 0.0
    %718 = vadd.xlane.f32.xlu0 %v717
    %v719 = vpop.xlane.xlu0 %718
    %v720 = vsel %vm312, %v716, 0.0
    %721 = vadd.xlane.f32.xlu0 %v720
    %v722 = vpop.xlane.xlu0 %721
    %v723 = vrcp.pop %v719
    %v724 = vrcp.pop %v722
    %v725 = vmul.f32 %v714, %v723
    %v726 = vmul.f32 %v716, %v724
    %727 = vrot.lane.b32.xlu0 %v251, 80
    %v728 = vpop.permute.xlu0 %727
    %v731 = vsel %vm312, %v725, 0
    %733 = vmatpush.msra.mxu0 0.0
    %734 = vmatpush.msra.mxu0 0.0
    %735 = vmatpush.msra.mxu0 0.0
    %736 = vmatpush.msra.mxu0 0.0
    %737 = vmatpush.msra.mxu0 0.0
    %738 = vmatpush.msra.mxu0 0.0
    %739 = vmatpush.msra.mxu0 0.0
    %740 = vmatpush.msra.mxu0 0.0
    %741 = vmatpush.msra.mxu0 0.0
    %742 = vmatpush.msra.mxu0 0.0
    %743 = vmatpush.msra.mxu0 0.0
    %744 = vmatpush.msra.mxu0 0.0
    %745 = vmatpush.msra.mxu0 0.0
    %746 = vmatpush.msra.mxu0 0.0
    %747 = vmatpush.msra.mxu0 0.0
    %748 = vmatpush.msra.mxu0 %v728
    %749 = vmatmul.f32.gmra.mxu0 %v731
    %v750 = vpop.f32.mrf.mxu0
    %v751 = vadd.f32 0.0, %v750
    %752 = vdwg.mxu0
    %753 = vrot.lane.b32.xlu0 %v254, 80
    %v754 = vpop.permute.xlu0 %753
    %v757 = vsel %vm312, %v726, 0
    %759 = vmatpush.msra.mxu0 0.0
    %760 = vmatpush.msra.mxu0 0.0
    %761 = vmatpush.msra.mxu0 0.0
    %762 = vmatpush.msra.mxu0 0.0
    %763 = vmatpush.msra.mxu0 0.0
    %764 = vmatpush.msra.mxu0 0.0
    %765 = vmatpush.msra.mxu0 0.0
    %766 = vmatpush.msra.mxu0 0.0
    %767 = vmatpush.msra.mxu0 0.0
    %768 = vmatpush.msra.mxu0 0.0
    %769 = vmatpush.msra.mxu0 0.0
    %770 = vmatpush.msra.mxu0 0.0
    %771 = vmatpush.msra.mxu0 0.0
    %772 = vmatpush.msra.mxu0 0.0
    %773 = vmatpush.msra.mxu0 0.0
    %774 = vmatpush.msra.mxu0 %v754
    %775 = vmatmul.f32.gmra.mxu0 %v757
    %v776 = vpop.f32.mrf.mxu0
    %v777 = vadd.f32 0.0, %v776
    %778 = vdwg.mxu0
    %781 = vrot.lane.b32.xlu0 %v486, 16
    %v782 = vpop.permute.xlu0 %781
    %783 = vrot.lane.b32.xlu0 %v513, 16
    %v784 = vpop.permute.xlu0 %783
    %789 = vrot.lane.b32.xlu0 %v619, 32
    %v790 = vpop.permute.xlu0 %789
    %791 = vrot.lane.b32.xlu0 %v645, 32
    %v792 = vpop.permute.xlu0 %791
    %797 = vrot.lane.b32.xlu0 %v751, 48
    %v798 = vpop.permute.xlu0 %797
    %799 = vrot.lane.b32.xlu0 %v777, 48
    %v800 = vpop.permute.xlu0 %799
    %v803 = vsel %vm102, %v356, %v782
    %v804 = vsel %vm102, %v379, %v784
    %vm805 = vcmask 261120
    %v806 = vsel %vm805, %v803, %v790
    %v807 = vsel %vm805, %v804, %v792
    %vm808 = vcmask 392192
    %v809 = vsel %vm808, %v806, %v798
    %v810 = vsel %vm808, %v807, %v800
    %v811 = vld [vmem:[%s3] sm:$0xff]
    %v812 = vld [vmem:[%s3 + $0x8] sm:$0xff]
    %v813 = vld [vmem:[%s3 + $0x10] sm:$0xff]
    %v814 = vld [vmem:[%s3 + $0x18] sm:$0xff]
    %v815 = vld [vmem:[%s3 + $0x20] sm:$0xff]
    %v816 = vld [vmem:[%s3 + $0x28] sm:$0xff]
    %v817 = vld [vmem:[%s3 + $0x30] sm:$0xff]
    %v818 = vld [vmem:[%s3 + $0x38] sm:$0xff]
    %v819 = vperm.slane %v94, 4
    %v821 = vsel %vm203, %v809, 0
    %v824 = vsel %vm203, %v810, 0
    %826 = vmatpush.msra.mxu0 0.0
    %827 = vmatpush.msra.mxu0 0.0
    %828 = vmatpush.msra.mxu0 0.0
    %829 = vmatpush.msra.mxu0 0.0
    %830 = vmatpush.msra.mxu0 0.0
    %831 = vmatpush.msra.mxu0 0.0
    %832 = vmatpush.msra.mxu0 0.0
    %833 = vmatpush.msra.mxu0 0.0
    %834 = vmatpush.msra.mxu0 %v818
    %835 = vmatpush.msra.mxu0 %v817
    %836 = vmatpush.msra.mxu0 %v816
    %837 = vmatpush.msra.mxu0 %v815
    %838 = vmatpush.msra.mxu0 %v814
    %839 = vmatpush.msra.mxu0 %v813
    %840 = vmatpush.msra.mxu0 %v812
    %841 = vmatpush.msra.mxu0 %v811
    %842 = vmatmul.f32.gmra.mxu0 %v821
    %v843 = vpop.f32.mrf.mxu0
    %v844 = vadd.f32 %v819, %v843
    %845 = vmatmul.f32.gmra.mxu0 %v824
    %v846 = vpop.f32.mrf.mxu0
    %v847 = vadd.f32 %v819, %v846
    %848 = vdwg.mxu0
    %v849 = vadd.f32 %v178, %v844
    %v850 = vadd.f32 %v179, %v847
    %v851 = vsel %vm203, %v849, 0.0
    %852 = vadd.xlane.f32.xlu0 %v851
    %v853 = vpop.xlane.xlu0 %852
    %v854 = vsel %vm203, %v850, 0.0
    %855 = vadd.xlane.f32.xlu0 %v854
    %v856 = vpop.xlane.xlu0 %855
    %v857 = vrcp.pop 64.0
    %v858 = vmul.f32 64.0, %v857
    %v859 = vsub.f32 1.0, %v858
    %v860 = vmul.f32 %v857, %v859
    %v861 = vadd.f32 %v857, %v860
    %vm862 = vweird.f32 %v857
    %v863 = vsel %vm862, %v857, %v861
    %v864 = vmul.f32 %v853, %v863
    %v865 = vmul.f32 %v856, %v863
    %v866 = vsub.f32 %v849, %v864
    %v867 = vsub.f32 %v850, %v865
    %v868 = vmul.f32 %v866, %v866
    %v869 = vmul.f32 %v867, %v867
    %v870 = vsel %vm203, %v868, 0.0
    %871 = vadd.xlane.f32.xlu0 %v870
    %v872 = vpop.xlane.xlu0 %871
    %v873 = vsel %vm203, %v869, 0.0
    %874 = vadd.xlane.f32.xlu0 %v873
    %v875 = vpop.xlane.xlu0 %874
    %v876 = vmul.f32 %v872, %v863
    %v877 = vmul.f32 %v875, %v863
    %v878 = vadd.f32 %v876, 1e-05
    %v879 = vadd.f32 %v877, 1e-05
    %v880 = vrsqrt.pop %v878
    %v881 = vmul.f32 %v880, %v878
    %v882 = vmul.f32 %v881, %v880
    %v883 = vmul.f32 0.5, %v882
    %v884 = vsub.f32 1.5, %v883
    %v885 = vmul.f32 %v880, %v884
    %vm886 = vweird.f32 %v878
    %vm887 = vweird.f32 %v880
    %vm888 = vmor %vm886, %vm887
    %v889 = vsel %vm888, %v880, %v885
    %v890 = vrsqrt.pop %v879
    %v891 = vmul.f32 %v890, %v879
    %v892 = vmul.f32 %v891, %v890
    %v893 = vmul.f32 0.5, %v892
    %v894 = vsub.f32 1.5, %v893
    %v895 = vmul.f32 %v890, %v894
    %vm896 = vweird.f32 %v879
    %vm897 = vweird.f32 %v890
    %vm898 = vmor %vm896, %vm897
    %v899 = vsel %vm898, %v890, %v895
    %v900 = vmul.f32 %v866, %v889
    %v901 = vmul.f32 %v867, %v899
    %v902 = vperm.slane %v94, 5
    %v903 = vmul.f32 %v900, %v902
    %v904 = vmul.f32 %v901, %v902
    %v905 = vperm.slane %v94, 6
    %v906 = vadd.f32 %v903, %v905
    %v907 = vadd.f32 %v904, %v905
    %v908 = vld [vmem:[%s4] sm:$0xff]
    %v909 = vld [vmem:[%s4 + $0x8] sm:$0xff]
    %v910 = vld [vmem:[%s4 + $0x10] sm:$0xff]
    %v911 = vld [vmem:[%s4 + $0x18] sm:$0xff]
    %v912 = vld [vmem:[%s4 + $0x20] sm:$0xff]
    %v913 = vld [vmem:[%s4 + $0x28] sm:$0xff]
    %v914 = vld [vmem:[%s4 + $0x30] sm:$0xff]
    %v915 = vld [vmem:[%s4 + $0x38] sm:$0xff]
    %v916 = vld [vmem:[%s4 + $0x40] sm:$0xff]
    %v917 = vld [vmem:[%s4 + $0x48] sm:$0xff]
    %v918 = vld [vmem:[%s4 + $0x50] sm:$0xff]
    %v919 = vld [vmem:[%s4 + $0x58] sm:$0xff]
    %v920 = vld [vmem:[%s4 + $0x60] sm:$0xff]
    %v921 = vld [vmem:[%s4 + $0x68] sm:$0xff]
    %v922 = vld [vmem:[%s4 + $0x70] sm:$0xff]
    %v923 = vld [vmem:[%s4 + $0x78] sm:$0xff]
    %v924 = vperm.slane %v96, 1
    %v925 = vperm.slane %v96, 5
    %v928 = vperm.slane %v924, 1
    %v929 = vperm.slane %v925, 1
    %v931 = vsel %vm203, %v906, 0
    %v934 = vsel %vm203, %v907, 0
    %936 = vmatpush.msra.mxu0 0.0
    %937 = vmatpush.msra.mxu0 0.0
    %938 = vmatpush.msra.mxu0 0.0
    %939 = vmatpush.msra.mxu0 0.0
    %940 = vmatpush.msra.mxu0 0.0
    %941 = vmatpush.msra.mxu0 0.0
    %942 = vmatpush.msra.mxu0 0.0
    %943 = vmatpush.msra.mxu0 0.0
    %944 = vmatpush.msra.mxu0 %v922
    %945 = vmatpush.msra.mxu0 %v920
    %946 = vmatpush.msra.mxu0 %v918
    %947 = vmatpush.msra.mxu0 %v916
    %948 = vmatpush.msra.mxu0 %v914
    %949 = vmatpush.msra.mxu0 %v912
    %950 = vmatpush.msra.mxu0 %v910
    %951 = vmatpush.msra.mxu0 %v908
    %952 = vmatmul.f32.gmra.mxu0 %v931
    %v953 = vpop.f32.mrf.mxu0
    %v954 = vadd.f32 %v928, %v953
    %955 = vmatmul.f32.gmra.mxu0 %v934
    %v956 = vpop.f32.mrf.mxu0
    %v957 = vadd.f32 %v928, %v956
    %958 = vdwg.mxu0
    %959 = vmatpush.msra.mxu0 0.0
    %960 = vmatpush.msra.mxu0 0.0
    %961 = vmatpush.msra.mxu0 0.0
    %962 = vmatpush.msra.mxu0 0.0
    %963 = vmatpush.msra.mxu0 0.0
    %964 = vmatpush.msra.mxu0 0.0
    %965 = vmatpush.msra.mxu0 0.0
    %966 = vmatpush.msra.mxu0 0.0
    %967 = vmatpush.msra.mxu0 %v923
    %968 = vmatpush.msra.mxu0 %v921
    %969 = vmatpush.msra.mxu0 %v919
    %970 = vmatpush.msra.mxu0 %v917
    %971 = vmatpush.msra.mxu0 %v915
    %972 = vmatpush.msra.mxu0 %v913
    %973 = vmatpush.msra.mxu0 %v911
    %974 = vmatpush.msra.mxu0 %v909
    %975 = vmatmul.f32.gmra.mxu0 %v931
    %v976 = vpop.f32.mrf.mxu0
    %v977 = vadd.f32 %v929, %v976
    %978 = vmatmul.f32.gmra.mxu0 %v934
    %v979 = vpop.f32.mrf.mxu0
    %v980 = vadd.f32 %v929, %v979
    %981 = vdwg.mxu0
    %v982 = vmax.f32 %v954, 0.0
    %v983 = vmax.f32 %v977, 0.0
    %v984 = vmax.f32 %v957, 0.0
    %v985 = vmax.f32 %v980, 0.0
    %v986 = vld [vmem:[%s5] sm:$0xff]
    %v987 = vld [vmem:[%s5 + $0x8] sm:$0xff]
    %v988 = vld [vmem:[%s5 + $0x10] sm:$0xff]
    %v989 = vld [vmem:[%s5 + $0x18] sm:$0xff]
    %v990 = vld [vmem:[%s5 + $0x20] sm:$0xff]
    %v991 = vld [vmem:[%s5 + $0x28] sm:$0xff]
    %v992 = vld [vmem:[%s5 + $0x30] sm:$0xff]
    %v993 = vld [vmem:[%s5 + $0x38] sm:$0xff]
    %v994 = vld [vmem:[%s5 + $0x40] sm:$0xff]
    %v995 = vld [vmem:[%s5 + $0x48] sm:$0xff]
    %v996 = vld [vmem:[%s5 + $0x50] sm:$0xff]
    %v997 = vld [vmem:[%s5 + $0x58] sm:$0xff]
    %v998 = vld [vmem:[%s5 + $0x60] sm:$0xff]
    %v999 = vld [vmem:[%s5 + $0x68] sm:$0xff]
    %v1000 = vld [vmem:[%s5 + $0x70] sm:$0xff]
    %v1001 = vld [vmem:[%s5 + $0x78] sm:$0xff]
    %v1002 = vld [vmem:[%s5 + $0x80] sm:$0xff]
    %v1003 = vld [vmem:[%s5 + $0x88] sm:$0xff]
    %v1004 = vld [vmem:[%s5 + $0x90] sm:$0xff]
    %v1005 = vld [vmem:[%s5 + $0x98] sm:$0xff]
    %v1006 = vld [vmem:[%s5 + $0xa0] sm:$0xff]
    %v1007 = vld [vmem:[%s5 + $0xa8] sm:$0xff]
    %v1008 = vld [vmem:[%s5 + $0xb0] sm:$0xff]
    %v1009 = vld [vmem:[%s5 + $0xb8] sm:$0xff]
    %v1010 = vld [vmem:[%s5 + $0xc0] sm:$0xff]
    %v1011 = vld [vmem:[%s5 + $0xc8] sm:$0xff]
    %v1012 = vld [vmem:[%s5 + $0xd0] sm:$0xff]
    %v1013 = vld [vmem:[%s5 + $0xd8] sm:$0xff]
    %v1014 = vld [vmem:[%s5 + $0xe0] sm:$0xff]
    %v1015 = vld [vmem:[%s5 + $0xe8] sm:$0xff]
    %v1016 = vld [vmem:[%s5 + $0xf0] sm:$0xff]
    %v1017 = vld [vmem:[%s5 + $0xf8] sm:$0xff]
    %v1018 = vperm.slane %v94, 7
    %1019 = vmatpush.msra.mxu0 %v1001
    %1020 = vmatpush.msra.mxu0 %v1000
    %1021 = vmatpush.msra.mxu0 %v999
    %1022 = vmatpush.msra.mxu0 %v998
    %1023 = vmatpush.msra.mxu0 %v997
    %1024 = vmatpush.msra.mxu0 %v996
    %1025 = vmatpush.msra.mxu0 %v995
    %1026 = vmatpush.msra.mxu0 %v994
    %1027 = vmatpush.msra.mxu0 %v993
    %1028 = vmatpush.msra.mxu0 %v992
    %1029 = vmatpush.msra.mxu0 %v991
    %1030 = vmatpush.msra.mxu0 %v990
    %1031 = vmatpush.msra.mxu0 %v989
    %1032 = vmatpush.msra.mxu0 %v988
    %1033 = vmatpush.msra.mxu0 %v987
    %1034 = vmatpush.msra.mxu0 %v986
    %1035 = vmatmul.f32.gmra.mxu0 %v982
    %v1036 = vpop.f32.mrf.mxu0
    %v1037 = vadd.f32 %v1018, %v1036
    %1038 = vmatmul.f32.gmra.mxu0 %v984
    %v1039 = vpop.f32.mrf.mxu0
    %v1040 = vadd.f32 %v1018, %v1039
    %1041 = vdwg.mxu0
    %1042 = vmatpush.msra.mxu0 %v1017
    %1043 = vmatpush.msra.mxu0 %v1016
    %1044 = vmatpush.msra.mxu0 %v1015
    %1045 = vmatpush.msra.mxu0 %v1014
    %1046 = vmatpush.msra.mxu0 %v1013
    %1047 = vmatpush.msra.mxu0 %v1012
    %1048 = vmatpush.msra.mxu0 %v1011
    %1049 = vmatpush.msra.mxu0 %v1010
    %1050 = vmatpush.msra.mxu0 %v1009
    %1051 = vmatpush.msra.mxu0 %v1008
    %1052 = vmatpush.msra.mxu0 %v1007
    %1053 = vmatpush.msra.mxu0 %v1006
    %1054 = vmatpush.msra.mxu0 %v1005
    %1055 = vmatpush.msra.mxu0 %v1004
    %1056 = vmatpush.msra.mxu0 %v1003
    %1057 = vmatpush.msra.mxu0 %v1002
    %1058 = vmatmul.f32.gmra.mxu0 %v983
    %v1059 = vpop.f32.mrf.mxu0
    %v1060 = vadd.f32 %v1037, %v1059
    %1061 = vmatmul.f32.gmra.mxu0 %v985
    %v1062 = vpop.f32.mrf.mxu0
    %v1063 = vadd.f32 %v1040, %v1062
    %1064 = vdwg.mxu0
    %v1065 = vadd.f32 %v906, %v1060
    %v1066 = vadd.f32 %v907, %v1063
    %v1067 = vsel %vm203, %v1065, 0.0
    %1068 = vadd.xlane.f32.xlu0 %v1067
    %v1069 = vpop.xlane.xlu0 %1068
    %v1070 = vsel %vm203, %v1066, 0.0
    %1071 = vadd.xlane.f32.xlu0 %v1070
    %v1072 = vpop.xlane.xlu0 %1071
    %v1073 = vmul.f32 %v1069, %v863
    %v1074 = vmul.f32 %v1072, %v863
    %v1075 = vsub.f32 %v1065, %v1073
    %v1076 = vsub.f32 %v1066, %v1074
    %v1077 = vmul.f32 %v1075, %v1075
    %v1078 = vmul.f32 %v1076, %v1076
    %v1079 = vsel %vm203, %v1077, 0.0
    %1080 = vadd.xlane.f32.xlu0 %v1079
    %v1081 = vpop.xlane.xlu0 %1080
    %v1082 = vsel %vm203, %v1078, 0.0
    %1083 = vadd.xlane.f32.xlu0 %v1082
    %v1084 = vpop.xlane.xlu0 %1083
    %v1085 = vmul.f32 %v1081, %v863
    %v1086 = vmul.f32 %v1084, %v863
    %v1087 = vadd.f32 %v1085, 1e-05
    %v1088 = vadd.f32 %v1086, 1e-05
    %v1089 = vrsqrt.pop %v1087
    %v1090 = vmul.f32 %v1089, %v1087
    %v1091 = vmul.f32 %v1090, %v1089
    %v1092 = vmul.f32 0.5, %v1091
    %v1093 = vsub.f32 1.5, %v1092
    %v1094 = vmul.f32 %v1089, %v1093
    %vm1095 = vweird.f32 %v1087
    %vm1096 = vweird.f32 %v1089
    %vm1097 = vmor %vm1095, %vm1096
    %v1098 = vsel %vm1097, %v1089, %v1094
    %v1099 = vrsqrt.pop %v1088
    %v1100 = vmul.f32 %v1099, %v1088
    %v1101 = vmul.f32 %v1100, %v1099
    %v1102 = vmul.f32 0.5, %v1101
    %v1103 = vsub.f32 1.5, %v1102
    %v1104 = vmul.f32 %v1099, %v1103
    %vm1105 = vweird.f32 %v1088
    %vm1106 = vweird.f32 %v1099
    %vm1107 = vmor %vm1105, %vm1106
    %v1108 = vsel %vm1107, %v1099, %v1104
    %v1109 = vmul.f32 %v1075, %v1098
    %v1110 = vmul.f32 %v1076, %v1108
    %v1111 = vperm.slane %v95, 0
    %v1112 = vmul.f32 %v1109, %v1111
    %v1113 = vmul.f32 %v1110, %v1111
    %v1114 = vperm.slane %v95, 1
    %v1115 = vadd.f32 %v1112, %v1114
    %v1116 = vadd.f32 %v1113, %v1114
    %v1117 = vld [vmem:[%s6] sm:$0xff]
    %v1118 = vld [vmem:[%s6 + $0x8] sm:$0xff]
    %v1119 = vld [vmem:[%s6 + $0x10] sm:$0xff]
    %v1120 = vld [vmem:[%s6 + $0x18] sm:$0xff]
    %v1121 = vld [vmem:[%s6 + $0x20] sm:$0xff]
    %v1122 = vld [vmem:[%s6 + $0x28] sm:$0xff]
    %v1123 = vld [vmem:[%s6 + $0x30] sm:$0xff]
    %v1124 = vld [vmem:[%s6 + $0x38] sm:$0xff]
    %v1125 = vperm.slane %v96, 2
    %v1128 = vrot.slane %v1115, 7
    %v1129 = vrot.slane %v1116, 6
    %vm1130 = vcmask 1041409
    %v1131 = vsel %vm1130, %v1129, %v1128
    %v1132 = vsel %vm203, %v1131, 0
    %1134 = vmatpush.msra.mxu0 0.0
    %1135 = vmatpush.msra.mxu0 0.0
    %1136 = vmatpush.msra.mxu0 0.0
    %1137 = vmatpush.msra.mxu0 0.0
    %1138 = vmatpush.msra.mxu0 0.0
    %1139 = vmatpush.msra.mxu0 0.0
    %1140 = vmatpush.msra.mxu0 0.0
    %1141 = vmatpush.msra.mxu0 0.0
    %1142 = vmatpush.msra.mxu0 %v1124
    %1143 = vmatpush.msra.mxu0 %v1123
    %1144 = vmatpush.msra.mxu0 %v1122
    %1145 = vmatpush.msra.mxu0 %v1121
    %1146 = vmatpush.msra.mxu0 %v1120
    %1147 = vmatpush.msra.mxu0 %v1119
    %1148 = vmatpush.msra.mxu0 %v1118
    %1149 = vmatpush.msra.mxu0 %v1117
    %1150 = vmatmul.f32.gmra.mxu0 %v1132
    %v1151 = vpop.f32.mrf.mxu0
    %v1152 = vadd.f32 %v1125, %v1151
    %1153 = vdwg.mxu0
    %1154 = vst [vmem:[#allocation10] sm:$0x3] %v1152
    // Predicated region
    $region54: #{tpu_custom_call.1} parent=1 // pred_check
      _
    $region55: #{tpu_custom_call.1} parent=1 // pred_check_branch
      %1156 = sbr.rel (0) target = $region57
    $region56: #{tpu_custom_call.1} parent=1 // pred_region
      %1158 = vsyncadd [#allocation4], 0
      %s1160 = sshll.u32 [#allocation10], 4
      %s1161 = int_to_ptr.vmem [resolvable:$true] %s1160
      %s1162 = sshll.u32 %s9, 4
      %s1163 = int_to_ptr.hbm [resolvable:$true] %s1162
      %1165 = dma.vmem_to_hbm [thread:$0]  %s1161, 32, %s1163, [#allocation4]
    $region57: #{tpu_custom_call.1} parent=1 // pred_fallthru
      _
    // Predicated region
    $region58: #{tpu_custom_call.1} parent=1 // pred_check
      _
    $region59: #{tpu_custom_call.1} parent=1 // pred_check_branch
      %1167 = sbr.rel (0) target = $region61
    $region60: #{tpu_custom_call.1} parent=1 // pred_region
      %1169 = dma.done [#allocation4], 32
    $region61: #{tpu_custom_call.1} parent=1 // pred_fallthru
      _
    %1170 = vsyncpa [#allocation3], 1
    %1171 = vsyncpa [#allocation6], 1
    %1172 = vsyncpa [#allocation9], 1
    %1173 = vsyncpa [#allocation4], 1

</llo_original>
